<compile_context>
chip_gen: v7x
topology: tpu7x:2x2x1
jax: 0.10.0
libtpu: 0.0.40
codegen_flags: <defaults>
</compile_context>

<pallas_src>
import functools

import numpy as np
import jax
import jax.numpy as jnp
from jax.experimental import pallas as pl
from jax.experimental.pallas import tpu as pltpu

DOMAINS = ("domain_a", "domain_b")  # two decoders, as in the original ModuleList
SR = 128                            # target length of F.interpolate(out, size=SR)

_PARALLEL = pltpu.CompilerParams(dimension_semantics=("parallel",))
# NOTE(v7x): at production widths also set vmem_limit_bytes and re-derive the
# time tile against 64 MiB VMEM; at these demo sizes everything is < 1 MiB.


# ----------------------------------------------------------------------------
# Fused Pallas kernels
# ----------------------------------------------------------------------------
def _time_index(shape, seg_len):
    """Lane index modulo the per-batch-segment length (folded-batch layout)."""
    t = jax.lax.broadcasted_iota(jnp.int32, shape, 1)
    if seg_len & (seg_len - 1) == 0:      # power of two -> cheap mask
        return t & (seg_len - 1)
    return t % seg_len


def _causal_tap(h, d, t_idx):
    """h[:, l] -> h[:, l - d] with zeros at the first d frames of each segment."""
    return jnp.where(t_idx >= d, pltpu.roll(h, d, axis=1), 0.0)


def _encoder_kernel(x_ref, w_start_ref, w_layers_ref, w_out_ref, lat_ref,
                    *, dilations, seg_len):
    x = x_ref[0]                                               # (Cin, BT) f32
    h = jnp.maximum(
        jnp.dot(w_start_ref[...], x, preferred_element_type=jnp.float32), 0.0)
    t_idx = _time_index(h.shape, seg_len)
    for l, d in enumerate(dilations):                          # static unroll
        xs = _causal_tap(h, d, t_idx)
        xin = jnp.concatenate([xs, h], axis=0).astype(jnp.bfloat16)   # (2Ce, BT)
        h = h + jnp.maximum(
            jnp.dot(w_layers_ref[l], xin, preferred_element_type=jnp.float32), 0.0)
    lat_ref[0] = jnp.dot(w_out_ref[...], h.astype(jnp.bfloat16),
                         preferred_element_type=jnp.float32).astype(lat_ref.dtype)


def _decoder_kernel(x_ref, cond_ref, w_start_ref, w_gate_ref, w_out_ref,
                    w_head1_ref, w_head2_ref, o_ref,
                    *, dilations, seg_len, c_dil, c_res):
    x = x_ref[0]                                               # (Cin, BT) f32
    c = cond_ref[0]                                            # (Clat, BT) f32 (loaded once)
    h = jnp.dot(w_start_ref[...], x, preferred_element_type=jnp.float32)   # (Cres, BT)
    t_idx = _time_index(h.shape, seg_len)
    c_skip = w_out_ref.shape[1] - c_res
    skip = jnp.zeros((c_skip, h.shape[1]), jnp.float32)        # in-kernel skip accumulator
    for l, d in enumerate(dilations):                          # static unroll
        xs = _causal_tap(h, d, t_idx)
        zin = jnp.concatenate([xs, h, c], axis=0).astype(jnp.bfloat16)  # (2Cres+Clat, BT)
        fg = jnp.dot(w_gate_ref[l], zin, preferred_element_type=jnp.float32)  # (2Cdil, BT)
        z = (jnp.tanh(fg[:c_dil]) * jax.nn.sigmoid(fg[c_dil:])).astype(jnp.bfloat16)
        rs = jnp.dot(w_out_ref[l], z, preferred_element_type=jnp.float32)     # (Cres+Cskip, BT)
        h = h + rs[:c_res]
        skip = skip + rs[c_res:]
    s = jnp.maximum(skip, 0.0).astype(jnp.bfloat16)
    h1 = jnp.maximum(
        jnp.dot(w_head1_ref[...], s, preferred_element_type=jnp.float32), 0.0)
    o_ref[0] = jnp.dot(w_head2_ref[...], h1.astype(jnp.bfloat16),
                       preferred_element_type=jnp.float32).astype(o_ref.dtype)


# ----------------------------------------------------------------------------
# Layout plumbing: fold batch into the lane axis so Bblk*T is lane-dense (>=128)
# ----------------------------------------------------------------------------
def _choose_bblk(B, T):
    bblk = min(B, max(1, -(-128 // T)))   # fold just enough batch to reach 128 lanes
    while B % bblk != 0:
        bblk -= 1
    return bblk


def _fold(x, bblk):
    """(B, C, T) -> (B//bblk, C, bblk*T); lane index = b_local*T + t."""
    B, C, T = x.shape
    G = B // bblk
    return x.reshape(G, bblk, C, T).transpose(0, 2, 1, 3).reshape(G, C, bblk * T)


def _unfold(y, bblk, B):
    G, C, BT = y.shape
    T = BT // bblk
    return y.reshape(G, C, bblk, T).transpose(0, 2, 1, 3).reshape(B, C, T)


# ----------------------------------------------------------------------------
# Wrappers around the two fused kernels
# ----------------------------------------------------------------------------
def encoder_forward(p, x, *, dilations, bblk):
    B, Cin, T = x.shape
    G, BT = B // bblk, bblk * T
    Ce = p["w_start"].shape[0]
    Cl = p["w_out"].shape[0]
    L = p["w_layers"].shape[0]
    xf = _fold(x, bblk)
    lat = pl.pallas_call(
        functools.partial(_encoder_kernel, dilations=dilations, seg_len=T),
        out_shape=jax.ShapeDtypeStruct((G, Cl, BT), jnp.float32),
        grid=(G,),
        in_specs=[
            pl.BlockSpec((1, Cin, BT), lambda g: (g, 0, 0)),
            pl.BlockSpec((Ce, Cin), lambda g: (0, 0)),
            pl.BlockSpec((L, Ce, 2 * Ce), lambda g: (0, 0, 0)),
            pl.BlockSpec((Cl, Ce), lambda g: (0, 0)),
        ],
        out_specs=pl.BlockSpec((1, Cl, BT), lambda g: (g, 0, 0)),
        compiler_params=_PARALLEL,
    )(xf, p["w_start"], p["w_layers"], p["w_out"])
    return _unfold(lat, bblk, B)


def decoder_forward(p, x, cond, *, dilations, bblk, c_dil, c_res):
    B, Cin, T = x.shape
    G, BT = B // bblk, bblk * T
    Cl = cond.shape[1]
    L = p["w_gate"].shape[0]
    Cgate = p["w_gate"].shape[1]           # 2 * Cdil
    Cro = p["w_out"].shape[1]              # Cres + Cskip
    Cs = p["w_head1"].shape[0]
    classes = p["w_head2"].shape[0]
    xf = _fold(x, bblk)
    cf = _fold(cond, bblk)
    out = pl.pallas_call(
        functools.partial(_decoder_kernel, dilations=dilations, seg_len=T,
                          c_dil=c_dil, c_res=c_res),
        out_shape=jax.ShapeDtypeStruct((G, classes, BT), jnp.float32),
        grid=(G,),
        in_specs=[
            pl.BlockSpec((1, Cin, BT), lambda g: (g, 0, 0)),
            pl.BlockSpec((1, Cl, BT), lambda g: (g, 0, 0)),
            pl.BlockSpec((c_res, Cin), lambda g: (0, 0)),
            pl.BlockSpec((L, Cgate, 2 * c_res + Cl), lambda g: (0, 0, 0)),
            pl.BlockSpec((L, Cro, c_dil), lambda g: (0, 0, 0)),
            pl.BlockSpec((Cs, Cs), lambda g: (0, 0)),
            pl.BlockSpec((classes, Cs), lambda g: (0, 0)),
        ],
        out_specs=pl.BlockSpec((1, classes, BT), lambda g: (g, 0, 0)),
        compiler_params=_PARALLEL,
    )(xf, cf, p["w_start"], p["w_gate"], p["w_out"], p["w_head1"], p["w_head2"])
    return _unfold(out, bblk, B)


def nearest_resize(x, size):
    """F.interpolate(x, size=size, mode='nearest') along the last axis."""
    T = x.shape[-1]
    idx = (jnp.arange(size) * T) // size
    return jnp.take(x, idx, axis=-1)


# ----------------------------------------------------------------------------
# Parameter init (deterministic, in-script; gated-conv weights pre-stacked)
# ----------------------------------------------------------------------------
class _KeyGen:
    def __init__(self, key):
        self._key = key

    def __call__(self):
        self._key, sub = jax.random.split(self._key)
        return sub


def _w(kg, shape, fan_in):
    return jax.random.normal(kg(), shape, jnp.float32) / np.sqrt(float(fan_in))


def init_params(key, cfg):
    kg = _KeyGen(key)
    Cin = cfg["in_channels"]
    Ce, Cl = cfg["enc_channels"], cfg["latent_channels"]
    Cr, Cd, Cs = cfg["residual_channels"], cfg["dilation_channels"], cfg["skip_channels"]
    classes = cfg["classes"]
    L_enc = cfg["enc_blocks"] * cfg["enc_layers"]
    L_dec = cfg["dec_blocks"] * cfg["dec_layers"]

    enc_layers = []
    for _ in range(L_enc):
        w0 = _w(kg, (Ce, Ce), 2 * Ce)      # acts on the dilated (shifted) tap
        w1 = _w(kg, (Ce, Ce), 2 * Ce)      # acts on the current frame
        enc_layers.append(jnp.concatenate([w0, w1], axis=1))
    encoder = {
        "w_start": _w(kg, (Ce, Cin), Cin),                       # f32 (tiny K=1 conv)
        "w_layers": jnp.stack(enc_layers).astype(jnp.bfloat16),  # (L, Ce, 2Ce)
        "w_out": _w(kg, (Cl, Ce), Ce).astype(jnp.bfloat16),
    }

    decoders = []
    for _ in DOMAINS:
        w_gate, w_out = [], []
        for _ in range(L_dec):
            wf0 = _w(kg, (Cd, Cr), 2 * Cr); wf1 = _w(kg, (Cd, Cr), 2 * Cr)
            wg0 = _w(kg, (Cd, Cr), 2 * Cr); wg1 = _w(kg, (Cd, Cr), 2 * Cr)
            wcf = _w(kg, (Cd, Cl), Cl);     wcg = _w(kg, (Cd, Cl), Cl)
            wres = _w(kg, (Cr, Cd), Cd);    wskip = _w(kg, (Cs, Cd), Cd)
            w_gate.append(jnp.concatenate(
                [jnp.concatenate([wf0, wf1, wcf], axis=1),
                 jnp.concatenate([wg0, wg1, wcg], axis=1)], axis=0))   # (2Cd, 2Cr+Cl)
            w_out.append(jnp.concatenate([wres, wskip], axis=0))       # (Cr+Cs, Cd)
        decoders.append({
            "w_start": _w(kg, (Cr, Cin), Cin),                   # f32
            "w_gate": jnp.stack(w_gate).astype(jnp.bfloat16),
            "w_out": jnp.stack(w_out).astype(jnp.bfloat16),
            "w_head1": _w(kg, (Cs, Cs), Cs).astype(jnp.bfloat16),
            "w_head2": _w(kg, (classes, Cs), Cs).astype(jnp.bfloat16),
        })
    return {"encoder": encoder, "decoders": decoders}


# ----------------------------------------------------------------------------
# UmtModel forward (encoder -> per-domain WaveNet decoder -> nearest interp)
# ----------------------------------------------------------------------------
class UmtModelPallas:
    def __init__(self, key, cfg):
        self.cfg = cfg
        assert cfg["kernel_size"] == 2
        self.params = init_params(key, cfg)
        self.enc_dilations = tuple(2 ** l for _ in range(cfg["enc_blocks"])
                                   for l in range(cfg["enc_layers"]))
        self.dec_dilations = tuple(2 ** l for _ in range(cfg["dec_blocks"])
                                   for l in range(cfg["dec_layers"]))
        k = cfg["kernel_size"]
        self.receptive_field = 1 + (k - 1) * cfg["dec_blocks"] * (2 ** cfg["dec_layers"] - 1)
        print("receptive field", self.receptive_field)
        # Whole forward is jitted; decoder pick is a host-side static choice.
        self._encode_jit = jax.jit(self._encode_impl)
        self._forward_jit = tuple(jax.jit(functools.partial(self._forward_impl, d))
                                  for d in range(len(DOMAINS)))

    # --- traced implementations -----------------------------------------
    def _encode_impl(self, x):
        B, _, T = x.shape
        pool = self.cfg["pool"]
        assert T % pool == 0, "temporal pooling requires T %% pool == 0"
        assert max(self.enc_dilations + self.dec_dilations) < T, "dilation >= T"
        bblk = _choose_bblk(B, T)
        lat = encoder_forward(self.params["encoder"], x,
                              dilations=self.enc_dilations, bblk=bblk)
        Cl = lat.shape[1]
        return lat.reshape(B, Cl, T // pool, pool).mean(axis=-1)   # temporal pooling

    def _forward_impl(self, domain_index, x):
        cfg = self.cfg
        B, _, T = x.shape
        latent = self._encode_impl(x)
        cond = nearest_resize(latent, T)        # upsample latent once; loaded once by kernel
        bblk = _choose_bblk(B, T)
        out = decoder_forward(self.params["decoders"][domain_index], x, cond,
                              dilations=self.dec_dilations, bblk=bblk,
                              c_dil=cfg["dilation_channels"],
                              c_res=cfg["residual_channels"])
        return nearest_resize(out, SR)          # F.interpolate(..., size=SR, mode='nearest')

    # --- public API (domain index resolved on host, outside tracing) ----
    @staticmethod
    def _check_domain(domain_index_arr):
        arr = np.asarray(domain_index_arr)
        d = int(arr[0])
        assert d < len(DOMAINS), "Unknown domain #%d" % d
        assert all(int(v) == d for v in arr), "Mixed domain batch encountered"
        return d

    def encode(self, input_tuple):
        domain_index_arr, x, _ = input_tuple
        self._check_domain(domain_index_arr)
        return self._encode_jit(x)

    def forward(self, input_tuple):
        domain_index_arr, x, _ = input_tuple
        d = self._check_domain(domain_index_arr)
        return self._forward_jit[d](x)


# ----------------------------------------------------------------------------
if __name__ == "__main__":
    cfg = dict(
        in_channels=1,
        classes=32,            # scaled down from 256
        enc_blocks=2, enc_layers=3, enc_channels=32, latent_channels=16, pool=4,
        dec_blocks=2, dec_layers=3,
        dilation_channels=16, residual_channels=16, skip_channels=32,
        kernel_size=2,
    )
    key = jax.random.PRNGKey(0)
    key_model, key_data = jax.random.split(key)

    model = UmtModelPallas(key_model, cfg)

    B, T = 2, 64
    x = jax.random.normal(key_data, (B, cfg["in_channels"], T), jnp.float32)
    domain_index = np.zeros((B,), dtype=np.int32)

    out = model.forward((domain_index, x, None))
    out = jax.block_until_ready(out)

    assert out.shape == (B, cfg["classes"], SR), out.shape
    assert jnp.all(jnp.isfinite(out))
    print("KERNEL_OK")
</pallas_src>

<mosaic_0001>
module attributes {stable_mosaic.version = 11 : i64} {
  func.func @_encoder_kernel(%arg0: i32, %arg1: memref<1x1x128xf32, #tpu.memory_space<vmem>>, %arg2: memref<32x1xf32, #tpu.memory_space<vmem>>, %arg3: memref<6x32x64xbf16, #tpu.memory_space<vmem>>, %arg4: memref<16x32xbf16, #tpu.memory_space<vmem>>, %arg5: memref<1x16x128xf32, #tpu.memory_space<vmem>>) attributes {dimension_semantics = [#tpu.dimension_semantics<parallel>], iteration_bounds = array<i64: 1>, scalar_prefetch = 0 : i64, scratch_operands = 0 : i64, tpu.core_type = #tpu.core_type<tc>, window_params = [{transform_indices = @transform_0, window_bounds = array<i64: 1, 1, 128>}, {pipeline_mode = #tpu.pipeline_mode<synchronous>, transform_indices = @transform_1, window_bounds = array<i64: 32, 1>}, {pipeline_mode = #tpu.pipeline_mode<synchronous>, transform_indices = @transform_2, window_bounds = array<i64: 6, 32, 64>}, {pipeline_mode = #tpu.pipeline_mode<synchronous>, transform_indices = @transform_3, window_bounds = array<i64: 16, 32>}, {transform_indices = @transform_4, window_bounds = array<i64: 1, 16, 128>}]} {
    %c0 = arith.constant 0 : index
    %c0_0 = arith.constant 0 : index
    %c0_1 = arith.constant 0 : index
    %0 = vector.load %arg1[%c0, %c0_0, %c0_1] : memref<1x1x128xf32, #tpu.memory_space<vmem>>, vector<1x1x128xf32>
    %1 = vector.shape_cast %0 : vector<1x1x128xf32> to vector<1x128xf32>
    %c0_2 = arith.constant 0 : index
    %c0_3 = arith.constant 0 : index
    %2 = vector.load %arg2[%c0_2, %c0_3] : memref<32x1xf32, #tpu.memory_space<vmem>>, vector<32x1xf32>
    %cst = arith.constant dense<0.000000e+00> : vector<32x128xf32>
    %3 = tpu.matmul %2, %1, %cst {dimension_numbers = #tpu.dot_dimension_numbers<[1], [0], [0], [1], [0, 0, 1, 1], [], []>} : vector<32x1xf32>, vector<1x128xf32>, vector<32x128xf32> -> vector<32x128xf32>
    %cst_4 = arith.constant 0.000000e+00 : f32
    %4 = vector.broadcast %cst_4 : f32 to vector<32x128xf32>
    %5 = arith.maximumf %3, %4 : vector<32x128xf32>
    %6 = tpu.iota {dimensions = array<i32: 1>} : vector<32x128xi32>
    %c63_i32 = arith.constant 63 : i32
    %7 = vector.broadcast %c63_i32 : i32 to vector<32x128xi32>
    %8 = arith.andi %6, %7 : vector<32x128xi32>
    %c1_i32 = arith.constant 1 : i32
    %9 = vector.broadcast %c1_i32 : i32 to vector<32x128xi32>
    %10 = arith.cmpi sge, %8, %9 : vector<32x128xi32>
    %c1_i32_5 = arith.constant 1 : i32
    %11 = tpu.dynamic_rotate %5 by %c1_i32_5 dim 1 : vector<32x128xf32>, i32 -> vector<32x128xf32>
    %cst_6 = arith.constant 0.000000e+00 : f32
    %12 = vector.broadcast %cst_6 : f32 to vector<32x128xf32>
    %13 = arith.select %10, %11, %12 : vector<32x128xi1>, vector<32x128xf32>
    %14 = tpu.concatenate %13, %5 in 0 : vector<32x128xf32>, vector<32x128xf32> -> vector<64x128xf32>
    %15 = arith.truncf %14 : vector<64x128xf32> to vector<64x128xbf16>
    %c0_7 = arith.constant 0 : index
    %c0_8 = arith.constant 0 : index
    %c0_9 = arith.constant 0 : index
    %16 = vector.load %arg3[%c0_7, %c0_8, %c0_9] : memref<6x32x64xbf16, #tpu.memory_space<vmem>>, vector<1x32x64xbf16>
    %17 = vector.shape_cast %16 : vector<1x32x64xbf16> to vector<32x64xbf16>
    %cst_10 = arith.constant dense<0.000000e+00> : vector<32x128xf32>
    %18 = tpu.matmul %17, %15, %cst_10 {dimension_numbers = #tpu.dot_dimension_numbers<[1], [0], [0], [1], [0, 0, 1, 1], [], []>} : vector<32x64xbf16>, vector<64x128xbf16>, vector<32x128xf32> -> vector<32x128xf32>
    %cst_11 = arith.constant 0.000000e+00 : f32
    %19 = vector.broadcast %cst_11 : f32 to vector<32x128xf32>
    %20 = arith.maximumf %18, %19 : vector<32x128xf32>
    %21 = arith.addf %5, %20 : vector<32x128xf32>
    %c2_i32 = arith.constant 2 : i32
    %22 = vector.broadcast %c2_i32 : i32 to vector<32x128xi32>
    %23 = arith.cmpi sge, %8, %22 : vector<32x128xi32>
    %c2_i32_12 = arith.constant 2 : i32
    %24 = tpu.dynamic_rotate %21 by %c2_i32_12 dim 1 : vector<32x128xf32>, i32 -> vector<32x128xf32>
    %cst_13 = arith.constant 0.000000e+00 : f32
    %25 = vector.broadcast %cst_13 : f32 to vector<32x128xf32>
    %26 = arith.select %23, %24, %25 : vector<32x128xi1>, vector<32x128xf32>
    %27 = tpu.concatenate %26, %21 in 0 : vector<32x128xf32>, vector<32x128xf32> -> vector<64x128xf32>
    %28 = arith.truncf %27 : vector<64x128xf32> to vector<64x128xbf16>
    %c1 = arith.constant 1 : index
    %c0_14 = arith.constant 0 : index
    %c0_15 = arith.constant 0 : index
    %29 = vector.load %arg3[%c1, %c0_14, %c0_15] : memref<6x32x64xbf16, #tpu.memory_space<vmem>>, vector<1x32x64xbf16>
    %30 = vector.shape_cast %29 : vector<1x32x64xbf16> to vector<32x64xbf16>
    %cst_16 = arith.constant dense<0.000000e+00> : vector<32x128xf32>
    %31 = tpu.matmul %30, %28, %cst_16 {dimension_numbers = #tpu.dot_dimension_numbers<[1], [0], [0], [1], [0, 0, 1, 1], [], []>} : vector<32x64xbf16>, vector<64x128xbf16>, vector<32x128xf32> -> vector<32x128xf32>
    %cst_17 = arith.constant 0.000000e+00 : f32
    %32 = vector.broadcast %cst_17 : f32 to vector<32x128xf32>
    %33 = arith.maximumf %31, %32 : vector<32x128xf32>
    %34 = arith.addf %21, %33 : vector<32x128xf32>
    %c4_i32 = arith.constant 4 : i32
    %35 = vector.broadcast %c4_i32 : i32 to vector<32x128xi32>
    %36 = arith.cmpi sge, %8, %35 : vector<32x128xi32>
    %c4_i32_18 = arith.constant 4 : i32
    %37 = tpu.dynamic_rotate %34 by %c4_i32_18 dim 1 : vector<32x128xf32>, i32 -> vector<32x128xf32>
    %cst_19 = arith.constant 0.000000e+00 : f32
    %38 = vector.broadcast %cst_19 : f32 to vector<32x128xf32>
    %39 = arith.select %36, %37, %38 : vector<32x128xi1>, vector<32x128xf32>
    %40 = tpu.concatenate %39, %34 in 0 : vector<32x128xf32>, vector<32x128xf32> -> vector<64x128xf32>
    %41 = arith.truncf %40 : vector<64x128xf32> to vector<64x128xbf16>
    %c2 = arith.constant 2 : index
    %c0_20 = arith.constant 0 : index
    %c0_21 = arith.constant 0 : index
    %42 = vector.load %arg3[%c2, %c0_20, %c0_21] : memref<6x32x64xbf16, #tpu.memory_space<vmem>>, vector<1x32x64xbf16>
    %43 = vector.shape_cast %42 : vector<1x32x64xbf16> to vector<32x64xbf16>
    %cst_22 = arith.constant dense<0.000000e+00> : vector<32x128xf32>
    %44 = tpu.matmul %43, %41, %cst_22 {dimension_numbers = #tpu.dot_dimension_numbers<[1], [0], [0], [1], [0, 0, 1, 1], [], []>} : vector<32x64xbf16>, vector<64x128xbf16>, vector<32x128xf32> -> vector<32x128xf32>
    %cst_23 = arith.constant 0.000000e+00 : f32
    %45 = vector.broadcast %cst_23 : f32 to vector<32x128xf32>
    %46 = arith.maximumf %44, %45 : vector<32x128xf32>
    %47 = arith.addf %34, %46 : vector<32x128xf32>
    %c1_i32_24 = arith.constant 1 : i32
    %48 = vector.broadcast %c1_i32_24 : i32 to vector<32x128xi32>
    %49 = arith.cmpi sge, %8, %48 : vector<32x128xi32>
    %c1_i32_25 = arith.constant 1 : i32
    %50 = tpu.dynamic_rotate %47 by %c1_i32_25 dim 1 : vector<32x128xf32>, i32 -> vector<32x128xf32>
    %cst_26 = arith.constant 0.000000e+00 : f32
    %51 = vector.broadcast %cst_26 : f32 to vector<32x128xf32>
    %52 = arith.select %49, %50, %51 : vector<32x128xi1>, vector<32x128xf32>
    %53 = tpu.concatenate %52, %47 in 0 : vector<32x128xf32>, vector<32x128xf32> -> vector<64x128xf32>
    %54 = arith.truncf %53 : vector<64x128xf32> to vector<64x128xbf16>
    %c3 = arith.constant 3 : index
    %c0_27 = arith.constant 0 : index
    %c0_28 = arith.constant 0 : index
    %55 = vector.load %arg3[%c3, %c0_27, %c0_28] : memref<6x32x64xbf16, #tpu.memory_space<vmem>>, vector<1x32x64xbf16>
    %56 = vector.shape_cast %55 : vector<1x32x64xbf16> to vector<32x64xbf16>
    %cst_29 = arith.constant dense<0.000000e+00> : vector<32x128xf32>
    %57 = tpu.matmul %56, %54, %cst_29 {dimension_numbers = #tpu.dot_dimension_numbers<[1], [0], [0], [1], [0, 0, 1, 1], [], []>} : vector<32x64xbf16>, vector<64x128xbf16>, vector<32x128xf32> -> vector<32x128xf32>
    %cst_30 = arith.constant 0.000000e+00 : f32
    %58 = vector.broadcast %cst_30 : f32 to vector<32x128xf32>
    %59 = arith.maximumf %57, %58 : vector<32x128xf32>
    %60 = arith.addf %47, %59 : vector<32x128xf32>
    %c2_i32_31 = arith.constant 2 : i32
    %61 = vector.broadcast %c2_i32_31 : i32 to vector<32x128xi32>
    %62 = arith.cmpi sge, %8, %61 : vector<32x128xi32>
    %c2_i32_32 = arith.constant 2 : i32
    %63 = tpu.dynamic_rotate %60 by %c2_i32_32 dim 1 : vector<32x128xf32>, i32 -> vector<32x128xf32>
    %cst_33 = arith.constant 0.000000e+00 : f32
    %64 = vector.broadcast %cst_33 : f32 to vector<32x128xf32>
    %65 = arith.select %62, %63, %64 : vector<32x128xi1>, vector<32x128xf32>
    %66 = tpu.concatenate %65, %60 in 0 : vector<32x128xf32>, vector<32x128xf32> -> vector<64x128xf32>
    %67 = arith.truncf %66 : vector<64x128xf32> to vector<64x128xbf16>
    %c4 = arith.constant 4 : index
    %c0_34 = arith.constant 0 : index
    %c0_35 = arith.constant 0 : index
    %68 = vector.load %arg3[%c4, %c0_34, %c0_35] : memref<6x32x64xbf16, #tpu.memory_space<vmem>>, vector<1x32x64xbf16>
    %69 = vector.shape_cast %68 : vector<1x32x64xbf16> to vector<32x64xbf16>
    %cst_36 = arith.constant dense<0.000000e+00> : vector<32x128xf32>
    %70 = tpu.matmul %69, %67, %cst_36 {dimension_numbers = #tpu.dot_dimension_numbers<[1], [0], [0], [1], [0, 0, 1, 1], [], []>} : vector<32x64xbf16>, vector<64x128xbf16>, vector<32x128xf32> -> vector<32x128xf32>
    %cst_37 = arith.constant 0.000000e+00 : f32
    %71 = vector.broadcast %cst_37 : f32 to vector<32x128xf32>
    %72 = arith.maximumf %70, %71 : vector<32x128xf32>
    %73 = arith.addf %60, %72 : vector<32x128xf32>
    %c4_i32_38 = arith.constant 4 : i32
    %74 = vector.broadcast %c4_i32_38 : i32 to vector<32x128xi32>
    %75 = arith.cmpi sge, %8, %74 : vector<32x128xi32>
    %c4_i32_39 = arith.constant 4 : i32
    %76 = tpu.dynamic_rotate %73 by %c4_i32_39 dim 1 : vector<32x128xf32>, i32 -> vector<32x128xf32>
    %cst_40 = arith.constant 0.000000e+00 : f32
    %77 = vector.broadcast %cst_40 : f32 to vector<32x128xf32>
    %78 = arith.select %75, %76, %77 : vector<32x128xi1>, vector<32x128xf32>
    %79 = tpu.concatenate %78, %73 in 0 : vector<32x128xf32>, vector<32x128xf32> -> vector<64x128xf32>
    %80 = arith.truncf %79 : vector<64x128xf32> to vector<64x128xbf16>
    %c5 = arith.constant 5 : index
    %c0_41 = arith.constant 0 : index
    %c0_42 = arith.constant 0 : index
    %81 = vector.load %arg3[%c5, %c0_41, %c0_42] : memref<6x32x64xbf16, #tpu.memory_space<vmem>>, vector<1x32x64xbf16>
    %82 = vector.shape_cast %81 : vector<1x32x64xbf16> to vector<32x64xbf16>
    %cst_43 = arith.constant dense<0.000000e+00> : vector<32x128xf32>
    %83 = tpu.matmul %82, %80, %cst_43 {dimension_numbers = #tpu.dot_dimension_numbers<[1], [0], [0], [1], [0, 0, 1, 1], [], []>} : vector<32x64xbf16>, vector<64x128xbf16>, vector<32x128xf32> -> vector<32x128xf32>
    %cst_44 = arith.constant 0.000000e+00 : f32
    %84 = vector.broadcast %cst_44 : f32 to vector<32x128xf32>
    %85 = arith.maximumf %83, %84 : vector<32x128xf32>
    %86 = arith.addf %73, %85 : vector<32x128xf32>
    %c0_45 = arith.constant 0 : index
    %c0_46 = arith.constant 0 : index
    %87 = vector.load %arg4[%c0_45, %c0_46] : memref<16x32xbf16, #tpu.memory_space<vmem>>, vector<16x32xbf16>
    %88 = arith.truncf %86 : vector<32x128xf32> to vector<32x128xbf16>
    %cst_47 = arith.constant dense<0.000000e+00> : vector<16x128xf32>
    %89 = tpu.matmul %87, %88, %cst_47 {dimension_numbers = #tpu.dot_dimension_numbers<[1], [0], [0], [1], [0, 0, 1, 1], [], []>} : vector<16x32xbf16>, vector<32x128xbf16>, vector<16x128xf32> -> vector<16x128xf32>
    %c0_48 = arith.constant 0 : index
    %c0_49 = arith.constant 0 : index
    %c0_50 = arith.constant 0 : index
    %90 = vector.load %arg5[%c0_48, %c0_49, %c0_50] : memref<1x16x128xf32, #tpu.memory_space<vmem>>, vector<1x16x128xf32>
    %91 = vector.shape_cast %90 : vector<1x16x128xf32> to vector<16x128xf32>
    %92 = vector.shape_cast %89 : vector<16x128xf32> to vector<1x16x128xf32>
    tpu.vector_store %arg5[%c0_48, %c0_49, %c0_50], %92 {strides = array<i32>} : memref<1x16x128xf32, #tpu.memory_space<vmem>>, vector<1x16x128xf32>,
    return
  }
  func.func @transform_0(%arg0: i32) -> (i32, i32, i32) {
    %c0_i32 = arith.constant 0 : i32
    %c0_i32_0 = arith.constant 0 : i32
    %c0_i32_1 = arith.constant 0 : i32
    return %arg0, %c0_i32, %c0_i32_0 : i32, i32, i32
  }
  func.func @transform_1(%arg0: i32) -> (i32, i32) {
    %c0_i32 = arith.constant 0 : i32
    %c0_i32_0 = arith.constant 0 : i32
    %c0_i32_1 = arith.constant 0 : i32
    return %c0_i32, %c0_i32_0 : i32, i32
  }
  func.func @transform_2(%arg0: i32) -> (i32, i32, i32) {
    %c0_i32 = arith.constant 0 : i32
    %c0_i32_0 = arith.constant 0 : i32
    %c0_i32_1 = arith.constant 0 : i32
    %c0_i32_2 = arith.constant 0 : i32
    return %c0_i32, %c0_i32_0, %c0_i32_1 : i32, i32, i32
  }
  func.func @transform_3(%arg0: i32) -> (i32, i32) {
    %c0_i32 = arith.constant 0 : i32
    %c0_i32_0 = arith.constant 0 : i32
    %c0_i32_1 = arith.constant 0 : i32
    return %c0_i32, %c0_i32_0 : i32, i32
  }
  func.func @transform_4(%arg0: i32) -> (i32, i32, i32) {
    %c0_i32 = arith.constant 0 : i32
    %c0_i32_0 = arith.constant 0 : i32
    %c0_i32_1 = arith.constant 0 : i32
    return %arg0, %c0_i32, %c0_i32_0 : i32, i32, i32
  }
}

module attributes {stable_mosaic.version = 11 : i64} {
  func.func @_decoder_kernel(%arg0: i32, %arg1: memref<1x1x128xf32, #tpu.memory_space<vmem>>, %arg2: memref<1x16x128xf32, #tpu.memory_space<vmem>>, %arg3: memref<16x1xf32, #tpu.memory_space<vmem>>, %arg4: memref<6x32x48xbf16, #tpu.memory_space<vmem>>, %arg5: memref<6x48x16xbf16, #tpu.memory_space<vmem>>, %arg6: memref<32x32xbf16, #tpu.memory_space<vmem>>, %arg7: memref<32x32xbf16, #tpu.memory_space<vmem>>, %arg8: memref<1x32x128xf32, #tpu.memory_space<vmem>>) attributes {dimension_semantics = [#tpu.dimension_semantics<parallel>], iteration_bounds = array<i64: 1>, scalar_prefetch = 0 : i64, scratch_operands = 0 : i64, tpu.core_type = #tpu.core_type<tc>, window_params = [{transform_indices = @transform_0, window_bounds = array<i64: 1, 1, 128>}, {transform_indices = @transform_1, window_bounds = array<i64: 1, 16, 128>}, {pipeline_mode = #tpu.pipeline_mode<synchronous>, transform_indices = @transform_2, window_bounds = array<i64: 16, 1>}, {pipeline_mode = #tpu.pipeline_mode<synchronous>, transform_indices = @transform_3, window_bounds = array<i64: 6, 32, 48>}, {pipeline_mode = #tpu.pipeline_mode<synchronous>, transform_indices = @transform_4, window_bounds = array<i64: 6, 48, 16>}, {pipeline_mode = #tpu.pipeline_mode<synchronous>, transform_indices = @transform_5, window_bounds = array<i64: 32, 32>}, {pipeline_mode = #tpu.pipeline_mode<synchronous>, transform_indices = @transform_6, window_bounds = array<i64: 32, 32>}, {transform_indices = @transform_7, window_bounds = array<i64: 1, 32, 128>}]} {
    %c0 = arith.constant 0 : index
    %c0_0 = arith.constant 0 : index
    %c0_1 = arith.constant 0 : index
    %0 = vector.load %arg1[%c0, %c0_0, %c0_1] : memref<1x1x128xf32, #tpu.memory_space<vmem>>, vector<1x1x128xf32>
    %1 = vector.shape_cast %0 : vector<1x1x128xf32> to vector<1x128xf32>
    %c0_2 = arith.constant 0 : index
    %c0_3 = arith.constant 0 : index
    %c0_4 = arith.constant 0 : index
    %2 = vector.load %arg2[%c0_2, %c0_3, %c0_4] : memref<1x16x128xf32, #tpu.memory_space<vmem>>, vector<1x16x128xf32>
    %3 = vector.shape_cast %2 : vector<1x16x128xf32> to vector<16x128xf32>
    %c0_5 = arith.constant 0 : index
    %c0_6 = arith.constant 0 : index
    %4 = vector.load %arg3[%c0_5, %c0_6] : memref<16x1xf32, #tpu.memory_space<vmem>>, vector<16x1xf32>
    %cst = arith.constant dense<0.000000e+00> : vector<16x128xf32>
    %5 = tpu.matmul %4, %1, %cst {dimension_numbers = #tpu.dot_dimension_numbers<[1], [0], [0], [1], [0, 0, 1, 1], [], []>} : vector<16x1xf32>, vector<1x128xf32>, vector<16x128xf32> -> vector<16x128xf32>
    %6 = tpu.iota {dimensions = array<i32: 1>} : vector<16x128xi32>
    %c63_i32 = arith.constant 63 : i32
    %7 = vector.broadcast %c63_i32 : i32 to vector<16x128xi32>
    %8 = arith.andi %6, %7 : vector<16x128xi32>
    %cst_7 = arith.constant 0.000000e+00 : f32
    %9 = vector.broadcast %cst_7 : f32 to vector<32x128xf32>
    %c1_i32 = arith.constant 1 : i32
    %10 = vector.broadcast %c1_i32 : i32 to vector<16x128xi32>
    %11 = arith.cmpi sge, %8, %10 : vector<16x128xi32>
    %c1_i32_8 = arith.constant 1 : i32
    %12 = tpu.dynamic_rotate %5 by %c1_i32_8 dim 1 : vector<16x128xf32>, i32 -> vector<16x128xf32>
    %cst_9 = arith.constant 0.000000e+00 : f32
    %13 = vector.broadcast %cst_9 : f32 to vector<16x128xf32>
    %14 = arith.select %11, %12, %13 : vector<16x128xi1>, vector<16x128xf32>
    %15 = tpu.concatenate %14, %5, %3 in 0 : vector<16x128xf32>, vector<16x128xf32>, vector<16x128xf32> -> vector<48x128xf32>
    %16 = arith.truncf %15 : vector<48x128xf32> to vector<48x128xbf16>
    %c0_10 = arith.constant 0 : index
    %c0_11 = arith.constant 0 : index
    %c0_12 = arith.constant 0 : index
    %17 = vector.load %arg4[%c0_10, %c0_11, %c0_12] : memref<6x32x48xbf16, #tpu.memory_space<vmem>>, vector<1x32x48xbf16>
    %18 = vector.shape_cast %17 : vector<1x32x48xbf16> to vector<32x48xbf16>
    %cst_13 = arith.constant dense<0.000000e+00> : vector<32x128xf32>
    %19 = tpu.matmul %18, %16, %cst_13 {dimension_numbers = #tpu.dot_dimension_numbers<[1], [0], [0], [1], [0, 0, 1, 1], [], []>} : vector<32x48xbf16>, vector<48x128xbf16>, vector<32x128xf32> -> vector<32x128xf32>
    %20 = vector.extract_strided_slice %19 {offsets = [0, 0], sizes = [16, 128], strides = [1, 1]} : vector<32x128xf32> to vector<16x128xf32>
    %21 = math.tanh %20 : vector<16x128xf32>
    %22 = vector.extract_strided_slice %19 {offsets = [16, 0], sizes = [16, 128], strides = [1, 1]} : vector<32x128xf32> to vector<16x128xf32>
    %23 = arith.negf %22 : vector<16x128xf32>
    %24 = math.exp %23 : vector<16x128xf32>
    %cst_14 = arith.constant 1.000000e+00 : f32
    %25 = vector.broadcast %cst_14 : f32 to vector<16x128xf32>
    %26 = arith.addf %25, %24 : vector<16x128xf32>
    %27 = arith.divf %25, %26 : vector<16x128xf32>
    %28 = arith.mulf %21, %27 : vector<16x128xf32>
    %29 = arith.truncf %28 : vector<16x128xf32> to vector<16x128xbf16>
    %c0_15 = arith.constant 0 : index
    %c0_16 = arith.constant 0 : index
    %c0_17 = arith.constant 0 : index
    %30 = vector.load %arg5[%c0_15, %c0_16, %c0_17] : memref<6x48x16xbf16, #tpu.memory_space<vmem>>, vector<1x48x16xbf16>
    %31 = vector.shape_cast %30 : vector<1x48x16xbf16> to vector<48x16xbf16>
    %cst_18 = arith.constant dense<0.000000e+00> : vector<48x128xf32>
    %32 = tpu.matmul %31, %29, %cst_18 {dimension_numbers = #tpu.dot_dimension_numbers<[1], [0], [0], [1], [0, 0, 1, 1], [], []>} : vector<48x16xbf16>, vector<16x128xbf16>, vector<48x128xf32> -> vector<48x128xf32>
    %33 = vector.extract_strided_slice %32 {offsets = [0, 0], sizes = [16, 128], strides = [1, 1]} : vector<48x128xf32> to vector<16x128xf32>
    %34 = arith.addf %5, %33 : vector<16x128xf32>
    %35 = vector.extract_strided_slice %32 {offsets = [16, 0], sizes = [32, 128], strides = [1, 1]} : vector<48x128xf32> to vector<32x128xf32>
    %36 = arith.addf %9, %35 : vector<32x128xf32>
    %c2_i32 = arith.constant 2 : i32
    %37 = vector.broadcast %c2_i32 : i32 to vector<16x128xi32>
    %38 = arith.cmpi sge, %8, %37 : vector<16x128xi32>
    %c2_i32_19 = arith.constant 2 : i32
    %39 = tpu.dynamic_rotate %34 by %c2_i32_19 dim 1 : vector<16x128xf32>, i32 -> vector<16x128xf32>
    %cst_20 = arith.constant 0.000000e+00 : f32
    %40 = vector.broadcast %cst_20 : f32 to vector<16x128xf32>
    %41 = arith.select %38, %39, %40 : vector<16x128xi1>, vector<16x128xf32>
    %42 = tpu.concatenate %41, %34, %3 in 0 : vector<16x128xf32>, vector<16x128xf32>, vector<16x128xf32> -> vector<48x128xf32>
    %43 = arith.truncf %42 : vector<48x128xf32> to vector<48x128xbf16>
    %c1 = arith.constant 1 : index
    %c0_21 = arith.constant 0 : index
    %c0_22 = arith.constant 0 : index
    %44 = vector.load %arg4[%c1, %c0_21, %c0_22] : memref<6x32x48xbf16, #tpu.memory_space<vmem>>, vector<1x32x48xbf16>
    %45 = vector.shape_cast %44 : vector<1x32x48xbf16> to vector<32x48xbf16>
    %cst_23 = arith.constant dense<0.000000e+00> : vector<32x128xf32>
    %46 = tpu.matmul %45, %43, %cst_23 {dimension_numbers = #tpu.dot_dimension_numbers<[1], [0], [0], [1], [0, 0, 1, 1], [], []>} : vector<32x48xbf16>, vector<48x128xbf16>, vector<32x128xf32> -> vector<32x128xf32>
    %47 = vector.extract_strided_slice %46 {offsets = [0, 0], sizes = [16, 128], strides = [1, 1]} : vector<32x128xf32> to vector<16x128xf32>
    %48 = math.tanh %47 : vector<16x128xf32>
    %49 = vector.extract_strided_slice %46 {offsets = [16, 0], sizes = [16, 128], strides = [1, 1]} : vector<32x128xf32> to vector<16x128xf32>
    %50 = arith.negf %49 : vector<16x128xf32>
    %51 = math.exp %50 : vector<16x128xf32>
    %cst_24 = arith.constant 1.000000e+00 : f32
    %52 = vector.broadcast %cst_24 : f32 to vector<16x128xf32>
    %53 = arith.addf %52, %51 : vector<16x128xf32>
    %54 = arith.divf %52, %53 : vector<16x128xf32>
    %55 = arith.mulf %48, %54 : vector<16x128xf32>
    %56 = arith.truncf %55 : vector<16x128xf32> to vector<16x128xbf16>
    %c1_25 = arith.constant 1 : index
    %c0_26 = arith.constant 0 : index
    %c0_27 = arith.constant 0 : index
    %57 = vector.load %arg5[%c1_25, %c0_26, %c0_27] : memref<6x48x16xbf16, #tpu.memory_space<vmem>>, vector<1x48x16xbf16>
    %58 = vector.shape_cast %57 : vector<1x48x16xbf16> to vector<48x16xbf16>
    %cst_28 = arith.constant dense<0.000000e+00> : vector<48x128xf32>
    %59 = tpu.matmul %58, %56, %cst_28 {dimension_numbers = #tpu.dot_dimension_numbers<[1], [0], [0], [1], [0, 0, 1, 1], [], []>} : vector<48x16xbf16>, vector<16x128xbf16>, vector<48x128xf32> -> vector<48x128xf32>
    %60 = vector.extract_strided_slice %59 {offsets = [0, 0], sizes = [16, 128], strides = [1, 1]} : vector<48x128xf32> to vector<16x128xf32>
    %61 = arith.addf %34, %60 : vector<16x128xf32>
    %62 = vector.extract_strided_slice %59 {offsets = [16, 0], sizes = [32, 128], strides = [1, 1]} : vector<48x128xf32> to vector<32x128xf32>
    %63 = arith.addf %36, %62 : vector<32x128xf32>
    %c4_i32 = arith.constant 4 : i32
    %64 = vector.broadcast %c4_i32 : i32 to vector<16x128xi32>
    %65 = arith.cmpi sge, %8, %64 : vector<16x128xi32>
    %c4_i32_29 = arith.constant 4 : i32
    %66 = tpu.dynamic_rotate %61 by %c4_i32_29 dim 1 : vector<16x128xf32>, i32 -> vector<16x128xf32>
    %cst_30 = arith.constant 0.000000e+00 : f32
    %67 = vector.broadcast %cst_30 : f32 to vector<16x128xf32>
    %68 = arith.select %65, %66, %67 : vector<16x128xi1>, vector<16x128xf32>
    %69 = tpu.concatenate %68, %61, %3 in 0 : vector<16x128xf32>, vector<16x128xf32>, vector<16x128xf32> -> vector<48x128xf32>
    %70 = arith.truncf %69 : vector<48x128xf32> to vector<48x128xbf16>
    %c2 = arith.constant 2 : index
    %c0_31 = arith.constant 0 : index
    %c0_32 = arith.constant 0 : index
    %71 = vector.load %arg4[%c2, %c0_31, %c0_32] : memref<6x32x48xbf16, #tpu.memory_space<vmem>>, vector<1x32x48xbf16>
    %72 = vector.shape_cast %71 : vector<1x32x48xbf16> to vector<32x48xbf16>
    %cst_33 = arith.constant dense<0.000000e+00> : vector<32x128xf32>
    %73 = tpu.matmul %72, %70, %cst_33 {dimension_numbers = #tpu.dot_dimension_numbers<[1], [0], [0], [1], [0, 0, 1, 1], [], []>} : vector<32x48xbf16>, vector<48x128xbf16>, vector<32x128xf32> -> vector<32x128xf32>
    %74 = vector.extract_strided_slice %73 {offsets = [0, 0], sizes = [16, 128], strides = [1, 1]} : vector<32x128xf32> to vector<16x128xf32>
    %75 = math.tanh %74 : vector<16x128xf32>
    %76 = vector.extract_strided_slice %73 {offsets = [16, 0], sizes = [16, 128], strides = [1, 1]} : vector<32x128xf32> to vector<16x128xf32>
    %77 = arith.negf %76 : vector<16x128xf32>
    %78 = math.exp %77 : vector<16x128xf32>
    %cst_34 = arith.constant 1.000000e+00 : f32
    %79 = vector.broadcast %cst_34 : f32 to vector<16x128xf32>
    %80 = arith.addf %79, %78 : vector<16x128xf32>
    %81 = arith.divf %79, %80 : vector<16x128xf32>
    %82 = arith.mulf %75, %81 : vector<16x128xf32>
    %83 = arith.truncf %82 : vector<16x128xf32> to vector<16x128xbf16>
    %c2_35 = arith.constant 2 : index
    %c0_36 = arith.constant 0 : index
    %c0_37 = arith.constant 0 : index
    %84 = vector.load %arg5[%c2_35, %c0_36, %c0_37] : memref<6x48x16xbf16, #tpu.memory_space<vmem>>, vector<1x48x16xbf16>
    %85 = vector.shape_cast %84 : vector<1x48x16xbf16> to vector<48x16xbf16>
    %cst_38 = arith.constant dense<0.000000e+00> : vector<48x128xf32>
    %86 = tpu.matmul %85, %83, %cst_38 {dimension_numbers = #tpu.dot_dimension_numbers<[1], [0], [0], [1], [0, 0, 1, 1], [], []>} : vector<48x16xbf16>, vector<16x128xbf16>, vector<48x128xf32> -> vector<48x128xf32>
    %87 = vector.extract_strided_slice %86 {offsets = [0, 0], sizes = [16, 128], strides = [1, 1]} : vector<48x128xf32> to vector<16x128xf32>
    %88 = arith.addf %61, %87 : vector<16x128xf32>
    %89 = vector.extract_strided_slice %86 {offsets = [16, 0], sizes = [32, 128], strides = [1, 1]} : vector<48x128xf32> to vector<32x128xf32>
    %90 = arith.addf %63, %89 : vector<32x128xf32>
    %c1_i32_39 = arith.constant 1 : i32
    %91 = vector.broadcast %c1_i32_39 : i32 to vector<16x128xi32>
    %92 = arith.cmpi sge, %8, %91 : vector<16x128xi32>
    %c1_i32_40 = arith.constant 1 : i32
    %93 = tpu.dynamic_rotate %88 by %c1_i32_40 dim 1 : vector<16x128xf32>, i32 -> vector<16x128xf32>
    %cst_41 = arith.constant 0.000000e+00 : f32
    %94 = vector.broadcast %cst_41 : f32 to vector<16x128xf32>
    %95 = arith.select %92, %93, %94 : vector<16x128xi1>, vector<16x128xf32>
    %96 = tpu.concatenate %95, %88, %3 in 0 : vector<16x128xf32>, vector<16x128xf32>, vector<16x128xf32> -> vector<48x128xf32>
    %97 = arith.truncf %96 : vector<48x128xf32> to vector<48x128xbf16>
    %c3 = arith.constant 3 : index
    %c0_42 = arith.constant 0 : index
    %c0_43 = arith.constant 0 : index
    %98 = vector.load %arg4[%c3, %c0_42, %c0_43] : memref<6x32x48xbf16, #tpu.memory_space<vmem>>, vector<1x32x48xbf16>
    %99 = vector.shape_cast %98 : vector<1x32x48xbf16> to vector<32x48xbf16>
    %cst_44 = arith.constant dense<0.000000e+00> : vector<32x128xf32>
    %100 = tpu.matmul %99, %97, %cst_44 {dimension_numbers = #tpu.dot_dimension_numbers<[1], [0], [0], [1], [0, 0, 1, 1], [], []>} : vector<32x48xbf16>, vector<48x128xbf16>, vector<32x128xf32> -> vector<32x128xf32>
    %101 = vector.extract_strided_slice %100 {offsets = [0, 0], sizes = [16, 128], strides = [1, 1]} : vector<32x128xf32> to vector<16x128xf32>
    %102 = math.tanh %101 : vector<16x128xf32>
    %103 = vector.extract_strided_slice %100 {offsets = [16, 0], sizes = [16, 128], strides = [1, 1]} : vector<32x128xf32> to vector<16x128xf32>
    %104 = arith.negf %103 : vector<16x128xf32>
    %105 = math.exp %104 : vector<16x128xf32>
    %cst_45 = arith.constant 1.000000e+00 : f32
    %106 = vector.broadcast %cst_45 : f32 to vector<16x128xf32>
    %107 = arith.addf %106, %105 : vector<16x128xf32>
    %108 = arith.divf %106, %107 : vector<16x128xf32>
    %109 = arith.mulf %102, %108 : vector<16x128xf32>
    %110 = arith.truncf %109 : vector<16x128xf32> to vector<16x128xbf16>
    %c3_46 = arith.constant 3 : index
    %c0_47 = arith.constant 0 : index
    %c0_48 = arith.constant 0 : index
    %111 = vector.load %arg5[%c3_46, %c0_47, %c0_48] : memref<6x48x16xbf16, #tpu.memory_space<vmem>>, vector<1x48x16xbf16>
    %112 = vector.shape_cast %111 : vector<1x48x16xbf16> to vector<48x16xbf16>
    %cst_49 = arith.constant dense<0.000000e+00> : vector<48x128xf32>
    %113 = tpu.matmul %112, %110, %cst_49 {dimension_numbers = #tpu.dot_dimension_numbers<[1], [0], [0], [1], [0, 0, 1, 1], [], []>} : vector<48x16xbf16>, vector<16x128xbf16>, vector<48x128xf32> -> vector<48x128xf32>
    %114 = vector.extract_strided_slice %113 {offsets = [0, 0], sizes = [16, 128], strides = [1, 1]} : vector<48x128xf32> to vector<16x128xf32>
    %115 = arith.addf %88, %114 : vector<16x128xf32>
    %116 = vector.extract_strided_slice %113 {offsets = [16, 0], sizes = [32, 128], strides = [1, 1]} : vector<48x128xf32> to vector<32x128xf32>
    %117 = arith.addf %90, %116 : vector<32x128xf32>
    %c2_i32_50 = arith.constant 2 : i32
    %118 = vector.broadcast %c2_i32_50 : i32 to vector<16x128xi32>
    %119 = arith.cmpi sge, %8, %118 : vector<16x128xi32>
    %c2_i32_51 = arith.constant 2 : i32
    %120 = tpu.dynamic_rotate %115 by %c2_i32_51 dim 1 : vector<16x128xf32>, i32 -> vector<16x128xf32>
    %cst_52 = arith.constant 0.000000e+00 : f32
    %121 = vector.broadcast %cst_52 : f32 to vector<16x128xf32>
    %122 = arith.select %119, %120, %121 : vector<16x128xi1>, vector<16x128xf32>
    %123 = tpu.concatenate %122, %115, %3 in 0 : vector<16x128xf32>, vector<16x128xf32>, vector<16x128xf32> -> vector<48x128xf32>
    %124 = arith.truncf %123 : vector<48x128xf32> to vector<48x128xbf16>
    %c4 = arith.constant 4 : index
    %c0_53 = arith.constant 0 : index
    %c0_54 = arith.constant 0 : index
    %125 = vector.load %arg4[%c4, %c0_53, %c0_54] : memref<6x32x48xbf16, #tpu.memory_space<vmem>>, vector<1x32x48xbf16>
    %126 = vector.shape_cast %125 : vector<1x32x48xbf16> to vector<32x48xbf16>
    %cst_55 = arith.constant dense<0.000000e+00> : vector<32x128xf32>
    %127 = tpu.matmul %126, %124, %cst_55 {dimension_numbers = #tpu.dot_dimension_numbers<[1], [0], [0], [1], [0, 0, 1, 1], [], []>} : vector<32x48xbf16>, vector<48x128xbf16>, vector<32x128xf32> -> vector<32x128xf32>
    %128 = vector.extract_strided_slice %127 {offsets = [0, 0], sizes = [16, 128], strides = [1, 1]} : vector<32x128xf32> to vector<16x128xf32>
    %129 = math.tanh %128 : vector<16x128xf32>
    %130 = vector.extract_strided_slice %127 {offsets = [16, 0], sizes = [16, 128], strides = [1, 1]} : vector<32x128xf32> to vector<16x128xf32>
    %131 = arith.negf %130 : vector<16x128xf32>
    %132 = math.exp %131 : vector<16x128xf32>
    %cst_56 = arith.constant 1.000000e+00 : f32
    %133 = vector.broadcast %cst_56 : f32 to vector<16x128xf32>
    %134 = arith.addf %133, %132 : vector<16x128xf32>
    %135 = arith.divf %133, %134 : vector<16x128xf32>
    %136 = arith.mulf %129, %135 : vector<16x128xf32>
    %137 = arith.truncf %136 : vector<16x128xf32> to vector<16x128xbf16>
    %c4_57 = arith.constant 4 : index
    %c0_58 = arith.constant 0 : index
    %c0_59 = arith.constant 0 : index
    %138 = vector.load %arg5[%c4_57, %c0_58, %c0_59] : memref<6x48x16xbf16, #tpu.memory_space<vmem>>, vector<1x48x16xbf16>
    %139 = vector.shape_cast %138 : vector<1x48x16xbf16> to vector<48x16xbf16>
    %cst_60 = arith.constant dense<0.000000e+00> : vector<48x128xf32>
    %140 = tpu.matmul %139, %137, %cst_60 {dimension_numbers = #tpu.dot_dimension_numbers<[1], [0], [0], [1], [0, 0, 1, 1], [], []>} : vector<48x16xbf16>, vector<16x128xbf16>, vector<48x128xf32> -> vector<48x128xf32>
    %141 = vector.extract_strided_slice %140 {offsets = [0, 0], sizes = [16, 128], strides = [1, 1]} : vector<48x128xf32> to vector<16x128xf32>
    %142 = arith.addf %115, %141 : vector<16x128xf32>
    %143 = vector.extract_strided_slice %140 {offsets = [16, 0], sizes = [32, 128], strides = [1, 1]} : vector<48x128xf32> to vector<32x128xf32>
    %144 = arith.addf %117, %143 : vector<32x128xf32>
    %c4_i32_61 = arith.constant 4 : i32
    %145 = vector.broadcast %c4_i32_61 : i32 to vector<16x128xi32>
    %146 = arith.cmpi sge, %8, %145 : vector<16x128xi32>
    %c4_i32_62 = arith.constant 4 : i32
    %147 = tpu.dynamic_rotate %142 by %c4_i32_62 dim 1 : vector<16x128xf32>, i32 -> vector<16x128xf32>
    %cst_63 = arith.constant 0.000000e+00 : f32
    %148 = vector.broadcast %cst_63 : f32 to vector<16x128xf32>
    %149 = arith.select %146, %147, %148 : vector<16x128xi1>, vector<16x128xf32>
    %150 = tpu.concatenate %149, %142, %3 in 0 : vector<16x128xf32>, vector<16x128xf32>, vector<16x128xf32> -> vector<48x128xf32>
    %151 = arith.truncf %150 : vector<48x128xf32> to vector<48x128xbf16>
    %c5 = arith.constant 5 : index
    %c0_64 = arith.constant 0 : index
    %c0_65 = arith.constant 0 : index
    %152 = vector.load %arg4[%c5, %c0_64, %c0_65] : memref<6x32x48xbf16, #tpu.memory_space<vmem>>, vector<1x32x48xbf16>
    %153 = vector.shape_cast %152 : vector<1x32x48xbf16> to vector<32x48xbf16>
    %cst_66 = arith.constant dense<0.000000e+00> : vector<32x128xf32>
    %154 = tpu.matmul %153, %151, %cst_66 {dimension_numbers = #tpu.dot_dimension_numbers<[1], [0], [0], [1], [0, 0, 1, 1], [], []>} : vector<32x48xbf16>, vector<48x128xbf16>, vector<32x128xf32> -> vector<32x128xf32>
    %155 = vector.extract_strided_slice %154 {offsets = [0, 0], sizes = [16, 128], strides = [1, 1]} : vector<32x128xf32> to vector<16x128xf32>
    %156 = math.tanh %155 : vector<16x128xf32>
    %157 = vector.extract_strided_slice %154 {offsets = [16, 0], sizes = [16, 128], strides = [1, 1]} : vector<32x128xf32> to vector<16x128xf32>
    %158 = arith.negf %157 : vector<16x128xf32>
    %159 = math.exp %158 : vector<16x128xf32>
    %cst_67 = arith.constant 1.000000e+00 : f32
    %160 = vector.broadcast %cst_67 : f32 to vector<16x128xf32>
    %161 = arith.addf %160, %159 : vector<16x128xf32>
    %162 = arith.divf %160, %161 : vector<16x128xf32>
    %163 = arith.mulf %156, %162 : vector<16x128xf32>
    %164 = arith.truncf %163 : vector<16x128xf32> to vector<16x128xbf16>
    %c5_68 = arith.constant 5 : index
    %c0_69 = arith.constant 0 : index
    %c0_70 = arith.constant 0 : index
    %165 = vector.load %arg5[%c5_68, %c0_69, %c0_70] : memref<6x48x16xbf16, #tpu.memory_space<vmem>>, vector<1x48x16xbf16>
    %166 = vector.shape_cast %165 : vector<1x48x16xbf16> to vector<48x16xbf16>
    %cst_71 = arith.constant dense<0.000000e+00> : vector<48x128xf32>
    %167 = tpu.matmul %166, %164, %cst_71 {dimension_numbers = #tpu.dot_dimension_numbers<[1], [0], [0], [1], [0, 0, 1, 1], [], []>} : vector<48x16xbf16>, vector<16x128xbf16>, vector<48x128xf32> -> vector<48x128xf32>
    %168 = vector.extract_strided_slice %167 {offsets = [16, 0], sizes = [32, 128], strides = [1, 1]} : vector<48x128xf32> to vector<32x128xf32>
    %169 = arith.addf %144, %168 : vector<32x128xf32>
    %cst_72 = arith.constant 0.000000e+00 : f32
    %170 = vector.broadcast %cst_72 : f32 to vector<32x128xf32>
    %171 = arith.maximumf %169, %170 : vector<32x128xf32>
    %172 = arith.truncf %171 : vector<32x128xf32> to vector<32x128xbf16>
    %c0_73 = arith.constant 0 : index
    %c0_74 = arith.constant 0 : index
    %173 = vector.load %arg6[%c0_73, %c0_74] : memref<32x32xbf16, #tpu.memory_space<vmem>>, vector<32x32xbf16>
    %cst_75 = arith.constant dense<0.000000e+00> : vector<32x128xf32>
    %174 = tpu.matmul %173, %172, %cst_75 {dimension_numbers = #tpu.dot_dimension_numbers<[1], [0], [0], [1], [0, 0, 1, 1], [], []>} : vector<32x32xbf16>, vector<32x128xbf16>, vector<32x128xf32> -> vector<32x128xf32>
    %cst_76 = arith.constant 0.000000e+00 : f32
    %175 = vector.broadcast %cst_76 : f32 to vector<32x128xf32>
    %176 = arith.maximumf %174, %175 : vector<32x128xf32>
    %c0_77 = arith.constant 0 : index
    %c0_78 = arith.constant 0 : index
    %177 = vector.load %arg7[%c0_77, %c0_78] : memref<32x32xbf16, #tpu.memory_space<vmem>>, vector<32x32xbf16>
    %178 = arith.truncf %176 : vector<32x128xf32> to vector<32x128xbf16>
    %cst_79 = arith.constant dense<0.000000e+00> : vector<32x128xf32>
    %179 = tpu.matmul %177, %178, %cst_79 {dimension_numbers = #tpu.dot_dimension_numbers<[1], [0], [0], [1], [0, 0, 1, 1], [], []>} : vector<32x32xbf16>, vector<32x128xbf16>, vector<32x128xf32> -> vector<32x128xf32>
    %c0_80 = arith.constant 0 : index
    %c0_81 = arith.constant 0 : index
    %c0_82 = arith.constant 0 : index
    %180 = vector.load %arg8[%c0_80, %c0_81, %c0_82] : memref<1x32x128xf32, #tpu.memory_space<vmem>>, vector<1x32x128xf32>
    %181 = vector.shape_cast %180 : vector<1x32x128xf32> to vector<32x128xf32>
    %182 = vector.shape_cast %179 : vector<32x128xf32> to vector<1x32x128xf32>
    tpu.vector_store %arg8[%c0_80, %c0_81, %c0_82], %182 {strides = array<i32>} : memref<1x32x128xf32, #tpu.memory_space<vmem>>, vector<1x32x128xf32>,
    return
  }
  func.func @transform_0(%arg0: i32) -> (i32, i32, i32) {
    %c0_i32 = arith.constant 0 : i32
    %c0_i32_0 = arith.constant 0 : i32
    %c0_i32_1 = arith.constant 0 : i32
    return %arg0, %c0_i32, %c0_i32_0 : i32, i32, i32
  }
  func.func @transform_1(%arg0: i32) -> (i32, i32, i32) {
    %c0_i32 = arith.constant 0 : i32
    %c0_i32_0 = arith.constant 0 : i32
    %c0_i32_1 = arith.constant 0 : i32
    return %arg0, %c0_i32, %c0_i32_0 : i32, i32, i32
  }
  func.func @transform_2(%arg0: i32) -> (i32, i32) {
    %c0_i32 = arith.constant 0 : i32
    %c0_i32_0 = arith.constant 0 : i32
    %c0_i32_1 = arith.constant 0 : i32
    return %c0_i32, %c0_i32_0 : i32, i32
  }
  func.func @transform_3(%arg0: i32) -> (i32, i32, i32) {
    %c0_i32 = arith.constant 0 : i32
    %c0_i32_0 = arith.constant 0 : i32
    %c0_i32_1 = arith.constant 0 : i32
    %c0_i32_2 = arith.constant 0 : i32
    return %c0_i32, %c0_i32_0, %c0_i32_1 : i32, i32, i32
  }
  func.func @transform_4(%arg0: i32) -> (i32, i32, i32) {
    %c0_i32 = arith.constant 0 : i32
    %c0_i32_0 = arith.constant 0 : i32
    %c0_i32_1 = arith.constant 0 : i32
    %c0_i32_2 = arith.constant 0 : i32
    return %c0_i32, %c0_i32_0, %c0_i32_1 : i32, i32, i32
  }
  func.func @transform_5(%arg0: i32) -> (i32, i32) {
    %c0_i32 = arith.constant 0 : i32
    %c0_i32_0 = arith.constant 0 : i32
    %c0_i32_1 = arith.constant 0 : i32
    return %c0_i32, %c0_i32_0 : i32, i32
  }
  func.func @transform_6(%arg0: i32) -> (i32, i32) {
    %c0_i32 = arith.constant 0 : i32
    %c0_i32_0 = arith.constant 0 : i32
    %c0_i32_1 = arith.constant 0 : i32
    return %c0_i32, %c0_i32_0 : i32, i32
  }
  func.func @transform_7(%arg0: i32) -> (i32, i32, i32) {
    %c0_i32 = arith.constant 0 : i32
    %c0_i32_0 = arith.constant 0 : i32
    %c0_i32_1 = arith.constant 0 : i32
    return %arg0, %c0_i32, %c0_i32_0 : i32, i32, i32
  }
}

</mosaic_0001>

<llo_original>
// kernel: _forward_impl.2
$region0: #{_forward_impl.2}
  #allocation0 [shape = 'u32[]', space=smem, size = 0x4, offset = 0x4, fixed_abs, tag = 'smem constant byte address 0x4 - core index']
  #allocation1 [shape = 'u32[144,128]{1,0:T(1,128)}', space=vmem, size = 0x12000, scoped, tag = 'internal scratch']
  %s0 = inlined_call_operand.vmem [shape: f32[1,1,128], index: 0, kind: input, shape index: {}]
  %s1 = inlined_call_operand.vmem [shape: f32[32,1], index: 1, kind: input, shape index: {}]
  %s2 = inlined_call_operand.hbm [shape: bf16[6,32,64], index: 2, kind: input, shape index: {}]
  %s3 = inlined_call_operand.vmem [shape: bf16[16,32], index: 3, kind: input, shape index: {}]
  %s4 = inlined_call_operand.vmem [shape: f32[1,16,128], index: 4, kind: output, shape index: {}]
  %s5 = sld [smem:[#allocation0]]
  $region30: #{_forward_impl.2} parent=0
    _
  %s7 = ssub.s32 1, %s5
  %s8 = scalar_select 0, %s7, %s5
  $region1: #{_forward_impl.2} parent=0
    #allocation2 [shape = 'u8[49152]{0}', space=vmem, size = 0xc000, scoped, tag = 'input window, operand 2, single buffered']
    #allocation3 [shape = 's32[1]{0}', space=sflag, size = 0x4, scoped, tag = 'scoped memory for _forward_impl.2']
    %9 = vsyncpa [#allocation3], 0
    // Predicated region
    $region2: #{_forward_impl.2} parent=1 // pred_check
      _
    $region3: #{_forward_impl.2} parent=1 // pred_check_branch
      %11 = sbr.rel (0) target = $region5
    $region4: #{_forward_impl.2} parent=1 // pred_region
      _
    $region5: #{_forward_impl.2} parent=1 // pred_fallthru
      _
    // Predicated region
    $region6: #{_forward_impl.2} parent=1 // pred_check
      _
    $region7: #{_forward_impl.2} parent=1 // pred_check_branch
      %13 = sbr.rel (0) target = $region9
    $region8: #{_forward_impl.2} parent=1 // pred_region
      _
    $region9: #{_forward_impl.2} parent=1 // pred_fallthru
      _
    // Predicated region
    $region10: #{_forward_impl.2} parent=1 // pred_check
      _
    $region11: #{_forward_impl.2} parent=1 // pred_check_branch
      %15 = sbr.rel (0) target = $region13
    $region12: #{_forward_impl.2} parent=1 // pred_region
      %s17 = ssub.s32 1536, 1536
      %18 = vsyncadd [#allocation3], %s17
      %s19 = sshll.u32 [#allocation2], 4
      %s20 = int_to_ptr.vmem [resolvable:$true] %s19
      %25 = dma.hbm_to_vmem [thread:$0]  %s2, 1536, %s20, [#allocation3], 64, 64, 4
    $region13: #{_forward_impl.2} parent=1 // pred_fallthru
      _
    // Predicated region
    $region14: #{_forward_impl.2} parent=1 // pred_check
      _
    $region15: #{_forward_impl.2} parent=1 // pred_check_branch
      %27 = sbr.rel (0) target = $region17
    $region16: #{_forward_impl.2} parent=1 // pred_region
      _
    $region17: #{_forward_impl.2} parent=1 // pred_fallthru
      _
    // Predicated region
    $region18: #{_forward_impl.2} parent=1 // pred_check
      _
    $region19: #{_forward_impl.2} parent=1 // pred_check_branch
      %29 = sbr.rel (0) target = $region21
    $region20: #{_forward_impl.2} parent=1 // pred_region
      %30 = dma.done [#allocation3], 1536
    $region21: #{_forward_impl.2} parent=1 // pred_fallthru
      _
    %v32 = vld [vmem:[%s0] sm:$0x1]
    %v33 = vld [vmem:[%s1] sm:$0xff]
    %v34 = vld [vmem:[%s1 + $0x8] sm:$0xff]
    %v35 = vld [vmem:[%s1 + $0x10] sm:$0xff]
    %v36 = vld [vmem:[%s1 + $0x18] sm:$0xff]
    %vm37 = vcmask 7168
    %v39 = vsel %vm37, %v33, 0
    %v42 = vsel %vm37, %v34, 0
    %v45 = vsel %vm37, %v35, 0
    %v48 = vsel %vm37, %v36, 0
    %vm50 = vcmask 1040384
    %v52 = vsel %vm50, %v32, 0
    %54 = vmatprep.subr.mxu0 0.0
    %55 = vmatpush1.msra.mxu0 %v52
    %56 = vmatprep.subr.mxu0 0.0
    %57 = vmatpush1.msra.mxu0 0.0
    %58 = vmatprep.subr.mxu0 0.0
    %59 = vmatpush1.msra.mxu0 0.0
    %60 = vmatprep.subr.mxu0 0.0
    %61 = vmatpush1.msra.mxu0 0.0
    %62 = vmatprep.subr.mxu0 0.0
    %63 = vmatpush1.msra.mxu0 0.0
    %64 = vmatprep.subr.mxu0 0.0
    %65 = vmatpush1.msra.mxu0 0.0
    %66 = vmatprep.subr.mxu0 0.0
    %67 = vmatpush1.msra.mxu0 0.0
    %68 = vmatprep.subr.mxu0 0.0
    %69 = vmatpush1.msra.mxu0 0.0
    %70 = vmatprep.subr.mxu0 0.0
    %71 = vmatpush1.msra.mxu0 0.0
    %72 = vmatprep.subr.mxu0 0.0
    %73 = vmatpush1.msra.mxu0 0.0
    %74 = vmatprep.subr.mxu0 0.0
    %75 = vmatpush1.msra.mxu0 0.0
    %76 = vmatprep.subr.mxu0 0.0
    %77 = vmatpush1.msra.mxu0 0.0
    %78 = vmatprep.subr.mxu0 0.0
    %79 = vmatpush1.msra.mxu0 0.0
    %80 = vmatprep.subr.mxu0 0.0
    %81 = vmatpush1.msra.mxu0 0.0
    %82 = vmatprep.subr.mxu0 0.0
    %83 = vmatpush1.msra.mxu0 0.0
    %84 = vmatprep.subr.mxu0 0.0
    %85 = vmatpush1.msra.mxu0 0.0
    %86 = vmatprep.subr.mxu0 0.0
    %87 = vmatpush1.msra.mxu0 0.0
    %88 = vmatprep.subr.mxu0 0.0
    %89 = vmatpush1.msra.mxu0 0.0
    %90 = vmatprep.subr.mxu0 0.0
    %91 = vmatpush1.msra.mxu0 0.0
    %92 = vmatprep.subr.mxu0 0.0
    %93 = vmatpush1.msra.mxu0 0.0
    %94 = vmatprep.subr.mxu0 0.0
    %95 = vmatpush1.msra.mxu0 0.0
    %96 = vmatprep.subr.mxu0 0.0
    %97 = vmatpush1.msra.mxu0 0.0
    %98 = vmatprep.subr.mxu0 0.0
    %99 = vmatpush1.msra.mxu0 0.0
    %100 = vmatprep.subr.mxu0 0.0
    %101 = vmatpush1.msra.mxu0 0.0
    %102 = vmatprep.subr.mxu0 0.0
    %103 = vmatpush1.msra.mxu0 0.0
    %104 = vmatprep.subr.mxu0 0.0
    %105 = vmatpush1.msra.mxu0 0.0
    %106 = vmatprep.subr.mxu0 0.0
    %107 = vmatpush1.msra.mxu0 0.0
    %108 = vmatprep.subr.mxu0 0.0
    %109 = vmatpush1.msra.mxu0 0.0
    %110 = vmatprep.subr.mxu0 0.0
    %111 = vmatpush1.msra.mxu0 0.0
    %112 = vmatprep.subr.mxu0 0.0
    %113 = vmatpush1.msra.mxu0 0.0
    %114 = vmatprep.subr.mxu0 0.0
    %115 = vmatpush1.msra.mxu0 0.0
    %116 = vmatprep.subr.mxu0 0.0
    %117 = vmatpush1.msra.mxu0 0.0
    %118 = vmatprep.mubr.f32.mxu0 0.0
    %119 = vmatmul.mubr.f32.gmra.mrb[0].mxu0 %v39
    %v120 = vpop.f32.mrb[0].mxu0
    %v121 = vadd.f32 0.0, %v120
    %v122 = vpop.f32.mrb[0].mxu0
    %123 = vmatprep.mubr.f32.mxu0 0.0
    %124 = vmatmul.mubr.f32.gmra.mrb[0].mxu0 %v42
    %v125 = vpop.f32.mrb[0].mxu0
    %v126 = vadd.f32 0.0, %v125
    %v127 = vpop.f32.mrb[0].mxu0
    %128 = vmatprep.mubr.f32.mxu0 0.0
    %129 = vmatmul.mubr.f32.gmra.mrb[0].mxu0 %v45
    %v130 = vpop.f32.mrb[0].mxu0
    %v131 = vadd.f32 0.0, %v130
    %v132 = vpop.f32.mrb[0].mxu0
    %133 = vmatprep.mubr.f32.mxu0 0.0
    %134 = vmatmul.mubr.f32.gmra.mrb[0].mxu0 %v48
    %v135 = vpop.f32.mrb[0].mxu0
    %v136 = vadd.f32 0.0, %v135
    %v137 = vpop.f32.mrb[0].mxu0
    %138 = vdwg.mxu0
    %v139 = vmax.f32 %v121, 0.0
    %v140 = vmax.f32 %v126, 0.0
    %v141 = vmax.f32 %v131, 0.0
    %v142 = vmax.f32 %v136, 0.0
    %v143 = vlaneseq
    %v144 = vand.u32 %v143, 127
    %v145 = vand.u32 %v144, 63
    %vm146 = vcmp.ge.s32.totalorder %v145, 1
    %147 = vrot.lane.b32.xlu0 %v139, 1
    %v148 = vpop.permute.xlu0 %147
    %149 = vrot.lane.b32.xlu0 %v140, 1
    %v150 = vpop.permute.xlu0 %149
    %151 = vrot.lane.b32.xlu0 %v141, 1
    %v152 = vpop.permute.xlu0 %151
    %153 = vrot.lane.b32.xlu0 %v142, 1
    %v154 = vpop.permute.xlu0 %153
    %v155 = vsel %vm146, %v148, 0.0
    %v156 = vsel %vm146, %v150, 0.0
    %v157 = vsel %vm146, %v152, 0.0
    %v158 = vsel %vm146, %v154, 0.0
    %v159 = vpack.c.bf16 %v156, %v155
    %v160 = vpack.c.bf16 %v158, %v157
    %v161 = vpack.c.bf16 %v140, %v139
    %v162 = vpack.c.bf16 %v142, %v141
    %v163 = vld [vmem:[#allocation2] sm:$0xf]
    %v164 = vld [vmem:[#allocation2 + $0x4] sm:$0xf]
    %v165 = vld [vmem:[#allocation2 + $0x8] sm:$0xf]
    %v166 = vld [vmem:[#allocation2 + $0xc] sm:$0xf]
    %v171 = vunpack.c.l.b16 %v163
    %v172 = vunpack.c.l.b16 %v164
    %v173 = vunpack.c.l.b16 %v165
    %v174 = vunpack.c.l.b16 %v166
    %v175 = vpack.c.b16 %v172, %v171
    %v176 = vpack.c.b16 %v174, %v173
    %vm177 = vcmask 523264
    %v179 = vsel %vm177, %v175, 0
    %v182 = vsel %vm177, %v176, 0
    %184 = vmatprep.subr.bf16.mxu0 0
    %185 = vmatpush1.bf16.msra.mxu0 %v159
    %186 = vmatprep.subr.bf16.mxu0 0
    %187 = vmatpush1.bf16.msra.mxu0 %v160
    %188 = vmatprep.subr.bf16.mxu0 0
    %189 = vmatpush1.bf16.msra.mxu0 %v161
    %190 = vmatprep.subr.bf16.mxu0 0
    %191 = vmatpush1.bf16.msra.mxu0 %v162
    %192 = vmatprep.subr.bf16.mxu0 0
    %193 = vmatpush1.bf16.msra.mxu0 0
    %194 = vmatprep.subr.bf16.mxu0 0
    %195 = vmatpush1.bf16.msra.mxu0 0
    %196 = vmatprep.subr.bf16.mxu0 0
    %197 = vmatpush1.bf16.msra.mxu0 0
    %198 = vmatprep.subr.bf16.mxu0 0
    %199 = vmatpush1.bf16.msra.mxu0 0
    %200 = vmatprep.subr.bf16.mxu0 0
    %201 = vmatpush1.bf16.msra.mxu0 0
    %202 = vmatprep.subr.bf16.mxu0 0
    %203 = vmatpush1.bf16.msra.mxu0 0
    %204 = vmatprep.subr.bf16.mxu0 0
    %205 = vmatpush1.bf16.msra.mxu0 0
    %206 = vmatprep.subr.bf16.mxu0 0
    %207 = vmatpush1.bf16.msra.mxu0 0
    %208 = vmatprep.subr.bf16.mxu0 0
    %209 = vmatpush1.bf16.msra.mxu0 0
    %210 = vmatprep.subr.bf16.mxu0 0
    %211 = vmatpush1.bf16.msra.mxu0 0
    %212 = vmatprep.subr.bf16.mxu0 0
    %213 = vmatpush1.bf16.msra.mxu0 0
    %214 = vmatprep.subr.bf16.mxu0 0
    %215 = vmatpush1.bf16.msra.mxu0 0
    %216 = vmatprep.mubr.bf16.mxu0 0
    %217 = vmatmul.mubr.bf16.gmra.mrb[0].mxu0 %v179
    %v218 = vpop.f32.mrb[0].mxu0
    %v219 = vadd.f32 0.0, %v218
    %v220 = vpop.f32.mrb[0].mxu0
    %v221 = vpop.f32.mrb[0].mxu0
    %v222 = vadd.f32 0.0, %v221
    %v223 = vpop.f32.mrb[0].mxu0
    %224 = vmatprep.mubr.bf16.mxu0 0
    %225 = vmatmul.mubr.bf16.gmra.mrb[0].mxu0 %v182
    %v226 = vpop.f32.mrb[0].mxu0
    %v227 = vadd.f32 0.0, %v226
    %v228 = vpop.f32.mrb[0].mxu0
    %v229 = vpop.f32.mrb[0].mxu0
    %v230 = vadd.f32 0.0, %v229
    %v231 = vpop.f32.mrb[0].mxu0
    %232 = vdwg.mxu0
    %v233 = vmax.f32 %v219, 0.0
    %v234 = vmax.f32 %v222, 0.0
    %v235 = vmax.f32 %v227, 0.0
    %v236 = vmax.f32 %v230, 0.0
    %v237 = vadd.f32 %v139, %v233
    %v238 = vadd.f32 %v140, %v234
    %v239 = vadd.f32 %v141, %v235
    %v240 = vadd.f32 %v142, %v236
    %vm241 = vcmp.ge.s32.totalorder %v145, 2
    %242 = vrot.lane.b32.xlu0 %v237, 2
    %v243 = vpop.permute.xlu0 %242
    %244 = vrot.lane.b32.xlu0 %v238, 2
    %v245 = vpop.permute.xlu0 %244
    %246 = vrot.lane.b32.xlu0 %v239, 2
    %v247 = vpop.permute.xlu0 %246
    %248 = vrot.lane.b32.xlu0 %v240, 2
    %v249 = vpop.permute.xlu0 %248
    %v250 = vsel %vm241, %v243, 0.0
    %v251 = vsel %vm241, %v245, 0.0
    %v252 = vsel %vm241, %v247, 0.0
    %v253 = vsel %vm241, %v249, 0.0
    %v254 = vpack.c.bf16 %v251, %v250
    %v255 = vpack.c.bf16 %v253, %v252
    %v256 = vpack.c.bf16 %v238, %v237
    %v257 = vpack.c.bf16 %v240, %v239
    %s258 = scalar_lea.vmem [#allocation2], 16
    %v259 = vld [vmem:[%s258] sm:$0xf]
    %v260 = vld [vmem:[%s258 + $0x4] sm:$0xf]
    %v261 = vld [vmem:[%s258 + $0x8] sm:$0xf]
    %v262 = vld [vmem:[%s258 + $0xc] sm:$0xf]
    %v267 = vunpack.c.l.b16 %v259
    %v268 = vunpack.c.l.b16 %v260
    %v269 = vunpack.c.l.b16 %v261
    %v270 = vunpack.c.l.b16 %v262
    %v271 = vpack.c.b16 %v268, %v267
    %v272 = vpack.c.b16 %v270, %v269
    %v274 = vsel %vm177, %v271, 0
    %v277 = vsel %vm177, %v272, 0
    %279 = vmatprep.subr.bf16.mxu0 0
    %280 = vmatpush1.bf16.msra.mxu0 %v254
    %281 = vmatprep.subr.bf16.mxu0 0
    %282 = vmatpush1.bf16.msra.mxu0 %v255
    %283 = vmatprep.subr.bf16.mxu0 0
    %284 = vmatpush1.bf16.msra.mxu0 %v256
    %285 = vmatprep.subr.bf16.mxu0 0
    %286 = vmatpush1.bf16.msra.mxu0 %v257
    %287 = vmatprep.subr.bf16.mxu0 0
    %288 = vmatpush1.bf16.msra.mxu0 0
    %289 = vmatprep.subr.bf16.mxu0 0
    %290 = vmatpush1.bf16.msra.mxu0 0
    %291 = vmatprep.subr.bf16.mxu0 0
    %292 = vmatpush1.bf16.msra.mxu0 0
    %293 = vmatprep.subr.bf16.mxu0 0
    %294 = vmatpush1.bf16.msra.mxu0 0
    %295 = vmatprep.subr.bf16.mxu0 0
    %296 = vmatpush1.bf16.msra.mxu0 0
    %297 = vmatprep.subr.bf16.mxu0 0
    %298 = vmatpush1.bf16.msra.mxu0 0
    %299 = vmatprep.subr.bf16.mxu0 0
    %300 = vmatpush1.bf16.msra.mxu0 0
    %301 = vmatprep.subr.bf16.mxu0 0
    %302 = vmatpush1.bf16.msra.mxu0 0
    %303 = vmatprep.subr.bf16.mxu0 0
    %304 = vmatpush1.bf16.msra.mxu0 0
    %305 = vmatprep.subr.bf16.mxu0 0
    %306 = vmatpush1.bf16.msra.mxu0 0
    %307 = vmatprep.subr.bf16.mxu0 0
    %308 = vmatpush1.bf16.msra.mxu0 0
    %309 = vmatprep.subr.bf16.mxu0 0
    %310 = vmatpush1.bf16.msra.mxu0 0
    %311 = vmatprep.mubr.bf16.mxu0 0
    %312 = vmatmul.mubr.bf16.gmra.mrb[0].mxu0 %v274
    %v313 = vpop.f32.mrb[0].mxu0
    %v314 = vadd.f32 0.0, %v313
    %v315 = vpop.f32.mrb[0].mxu0
    %v316 = vpop.f32.mrb[0].mxu0
    %v317 = vadd.f32 0.0, %v316
    %v318 = vpop.f32.mrb[0].mxu0
    %319 = vmatprep.mubr.bf16.mxu0 0
    %320 = vmatmul.mubr.bf16.gmra.mrb[0].mxu0 %v277
    %v321 = vpop.f32.mrb[0].mxu0
    %v322 = vadd.f32 0.0, %v321
    %v323 = vpop.f32.mrb[0].mxu0
    %v324 = vpop.f32.mrb[0].mxu0
    %v325 = vadd.f32 0.0, %v324
    %v326 = vpop.f32.mrb[0].mxu0
    %327 = vdwg.mxu0
    %v328 = vmax.f32 %v314, 0.0
    %v329 = vmax.f32 %v317, 0.0
    %v330 = vmax.f32 %v322, 0.0
    %v331 = vmax.f32 %v325, 0.0
    %v332 = vadd.f32 %v237, %v328
    %v333 = vadd.f32 %v238, %v329
    %v334 = vadd.f32 %v239, %v330
    %v335 = vadd.f32 %v240, %v331
    %vm336 = vcmp.ge.s32.totalorder %v145, 4
    %337 = vrot.lane.b32.xlu0 %v332, 4
    %v338 = vpop.permute.xlu0 %337
    %339 = vrot.lane.b32.xlu0 %v333, 4
    %v340 = vpop.permute.xlu0 %339
    %341 = vrot.lane.b32.xlu0 %v334, 4
    %v342 = vpop.permute.xlu0 %341
    %343 = vrot.lane.b32.xlu0 %v335, 4
    %v344 = vpop.permute.xlu0 %343
    %v345 = vsel %vm336, %v338, 0.0
    %v346 = vsel %vm336, %v340, 0.0
    %v347 = vsel %vm336, %v342, 0.0
    %v348 = vsel %vm336, %v344, 0.0
    %v349 = vpack.c.bf16 %v346, %v345
    %v350 = vpack.c.bf16 %v348, %v347
    %v351 = vpack.c.bf16 %v333, %v332
    %v352 = vpack.c.bf16 %v335, %v334
    %s353 = scalar_lea.vmem [#allocation2], 32
    %v354 = vld [vmem:[%s353] sm:$0xf]
    %v355 = vld [vmem:[%s353 + $0x4] sm:$0xf]
    %v356 = vld [vmem:[%s353 + $0x8] sm:$0xf]
    %v357 = vld [vmem:[%s353 + $0xc] sm:$0xf]
    %v362 = vunpack.c.l.b16 %v354
    %v363 = vunpack.c.l.b16 %v355
    %v364 = vunpack.c.l.b16 %v356
    %v365 = vunpack.c.l.b16 %v357
    %v366 = vpack.c.b16 %v363, %v362
    %v367 = vpack.c.b16 %v365, %v364
    %v369 = vsel %vm177, %v366, 0
    %v372 = vsel %vm177, %v367, 0
    %374 = vmatprep.subr.bf16.mxu0 0
    %375 = vmatpush1.bf16.msra.mxu0 %v349
    %376 = vmatprep.subr.bf16.mxu0 0
    %377 = vmatpush1.bf16.msra.mxu0 %v350
    %378 = vmatprep.subr.bf16.mxu0 0
    %379 = vmatpush1.bf16.msra.mxu0 %v351
    %380 = vmatprep.subr.bf16.mxu0 0
    %381 = vmatpush1.bf16.msra.mxu0 %v352
    %382 = vmatprep.subr.bf16.mxu0 0
    %383 = vmatpush1.bf16.msra.mxu0 0
    %384 = vmatprep.subr.bf16.mxu0 0
    %385 = vmatpush1.bf16.msra.mxu0 0
    %386 = vmatprep.subr.bf16.mxu0 0
    %387 = vmatpush1.bf16.msra.mxu0 0
    %388 = vmatprep.subr.bf16.mxu0 0
    %389 = vmatpush1.bf16.msra.mxu0 0
    %390 = vmatprep.subr.bf16.mxu0 0
    %391 = vmatpush1.bf16.msra.mxu0 0
    %392 = vmatprep.subr.bf16.mxu0 0
    %393 = vmatpush1.bf16.msra.mxu0 0
    %394 = vmatprep.subr.bf16.mxu0 0
    %395 = vmatpush1.bf16.msra.mxu0 0
    %396 = vmatprep.subr.bf16.mxu0 0
    %397 = vmatpush1.bf16.msra.mxu0 0
    %398 = vmatprep.subr.bf16.mxu0 0
    %399 = vmatpush1.bf16.msra.mxu0 0
    %400 = vmatprep.subr.bf16.mxu0 0
    %401 = vmatpush1.bf16.msra.mxu0 0
    %402 = vmatprep.subr.bf16.mxu0 0
    %403 = vmatpush1.bf16.msra.mxu0 0
    %404 = vmatprep.subr.bf16.mxu0 0
    %405 = vmatpush1.bf16.msra.mxu0 0
    %406 = vmatprep.mubr.bf16.mxu0 0
    %407 = vmatmul.mubr.bf16.gmra.mrb[0].mxu0 %v369
    %v408 = vpop.f32.mrb[0].mxu0
    %v409 = vadd.f32 0.0, %v408
    %v410 = vpop.f32.mrb[0].mxu0
    %v411 = vpop.f32.mrb[0].mxu0
    %v412 = vadd.f32 0.0, %v411
    %v413 = vpop.f32.mrb[0].mxu0
    %414 = vmatprep.mubr.bf16.mxu0 0
    %415 = vmatmul.mubr.bf16.gmra.mrb[0].mxu0 %v372
    %v416 = vpop.f32.mrb[0].mxu0
    %v417 = vadd.f32 0.0, %v416
    %v418 = vpop.f32.mrb[0].mxu0
    %v419 = vpop.f32.mrb[0].mxu0
    %v420 = vadd.f32 0.0, %v419
    %v421 = vpop.f32.mrb[0].mxu0
    %422 = vdwg.mxu0
    %v423 = vmax.f32 %v409, 0.0
    %v424 = vmax.f32 %v412, 0.0
    %v425 = vmax.f32 %v417, 0.0
    %v426 = vmax.f32 %v420, 0.0
    %v427 = vadd.f32 %v332, %v423
    %v428 = vadd.f32 %v333, %v424
    %v429 = vadd.f32 %v334, %v425
    %v430 = vadd.f32 %v335, %v426
    %431 = vrot.lane.b32.xlu0 %v427, 1
    %v432 = vpop.permute.xlu0 %431
    %433 = vrot.lane.b32.xlu0 %v428, 1
    %v434 = vpop.permute.xlu0 %433
    %435 = vrot.lane.b32.xlu0 %v429, 1
    %v436 = vpop.permute.xlu0 %435
    %437 = vrot.lane.b32.xlu0 %v430, 1
    %v438 = vpop.permute.xlu0 %437
    %v439 = vsel %vm146, %v432, 0.0
    %v440 = vsel %vm146, %v434, 0.0
    %v441 = vsel %vm146, %v436, 0.0
    %v442 = vsel %vm146, %v438, 0.0
    %v443 = vpack.c.bf16 %v440, %v439
    %v444 = vpack.c.bf16 %v442, %v441
    %v445 = vpack.c.bf16 %v428, %v427
    %v446 = vpack.c.bf16 %v430, %v429
    %s447 = scalar_lea.vmem [#allocation2], 48
    %v448 = vld [vmem:[%s447] sm:$0xf]
    %v449 = vld [vmem:[%s447 + $0x4] sm:$0xf]
    %v450 = vld [vmem:[%s447 + $0x8] sm:$0xf]
    %v451 = vld [vmem:[%s447 + $0xc] sm:$0xf]
    %v456 = vunpack.c.l.b16 %v448
    %v457 = vunpack.c.l.b16 %v449
    %v458 = vunpack.c.l.b16 %v450
    %v459 = vunpack.c.l.b16 %v451
    %v460 = vpack.c.b16 %v457, %v456
    %v461 = vpack.c.b16 %v459, %v458
    %v463 = vsel %vm177, %v460, 0
    %v466 = vsel %vm177, %v461, 0
    %468 = vmatprep.subr.bf16.mxu0 0
    %469 = vmatpush1.bf16.msra.mxu0 %v443
    %470 = vmatprep.subr.bf16.mxu0 0
    %471 = vmatpush1.bf16.msra.mxu0 %v444
    %472 = vmatprep.subr.bf16.mxu0 0
    %473 = vmatpush1.bf16.msra.mxu0 %v445
    %474 = vmatprep.subr.bf16.mxu0 0
    %475 = vmatpush1.bf16.msra.mxu0 %v446
    %476 = vmatprep.subr.bf16.mxu0 0
    %477 = vmatpush1.bf16.msra.mxu0 0
    %478 = vmatprep.subr.bf16.mxu0 0
    %479 = vmatpush1.bf16.msra.mxu0 0
    %480 = vmatprep.subr.bf16.mxu0 0
    %481 = vmatpush1.bf16.msra.mxu0 0
    %482 = vmatprep.subr.bf16.mxu0 0
    %483 = vmatpush1.bf16.msra.mxu0 0
    %484 = vmatprep.subr.bf16.mxu0 0
    %485 = vmatpush1.bf16.msra.mxu0 0
    %486 = vmatprep.subr.bf16.mxu0 0
    %487 = vmatpush1.bf16.msra.mxu0 0
    %488 = vmatprep.subr.bf16.mxu0 0
    %489 = vmatpush1.bf16.msra.mxu0 0
    %490 = vmatprep.subr.bf16.mxu0 0
    %491 = vmatpush1.bf16.msra.mxu0 0
    %492 = vmatprep.subr.bf16.mxu0 0
    %493 = vmatpush1.bf16.msra.mxu0 0
    %494 = vmatprep.subr.bf16.mxu0 0
    %495 = vmatpush1.bf16.msra.mxu0 0
    %496 = vmatprep.subr.bf16.mxu0 0
    %497 = vmatpush1.bf16.msra.mxu0 0
    %498 = vmatprep.subr.bf16.mxu0 0
    %499 = vmatpush1.bf16.msra.mxu0 0
    %500 = vmatprep.mubr.bf16.mxu0 0
    %501 = vmatmul.mubr.bf16.gmra.mrb[0].mxu0 %v463
    %v502 = vpop.f32.mrb[0].mxu0
    %v503 = vadd.f32 0.0, %v502
    %v504 = vpop.f32.mrb[0].mxu0
    %v505 = vpop.f32.mrb[0].mxu0
    %v506 = vadd.f32 0.0, %v505
    %v507 = vpop.f32.mrb[0].mxu0
    %508 = vmatprep.mubr.bf16.mxu0 0
    %509 = vmatmul.mubr.bf16.gmra.mrb[0].mxu0 %v466
    %v510 = vpop.f32.mrb[0].mxu0
    %v511 = vadd.f32 0.0, %v510
    %v512 = vpop.f32.mrb[0].mxu0
    %v513 = vpop.f32.mrb[0].mxu0
    %v514 = vadd.f32 0.0, %v513
    %v515 = vpop.f32.mrb[0].mxu0
    %516 = vdwg.mxu0
    %v517 = vmax.f32 %v503, 0.0
    %v518 = vmax.f32 %v506, 0.0
    %v519 = vmax.f32 %v511, 0.0
    %v520 = vmax.f32 %v514, 0.0
    %v521 = vadd.f32 %v427, %v517
    %v522 = vadd.f32 %v428, %v518
    %v523 = vadd.f32 %v429, %v519
    %v524 = vadd.f32 %v430, %v520
    %525 = vrot.lane.b32.xlu0 %v521, 2
    %v526 = vpop.permute.xlu0 %525
    %527 = vrot.lane.b32.xlu0 %v522, 2
    %v528 = vpop.permute.xlu0 %527
    %529 = vrot.lane.b32.xlu0 %v523, 2
    %v530 = vpop.permute.xlu0 %529
    %531 = vrot.lane.b32.xlu0 %v524, 2
    %v532 = vpop.permute.xlu0 %531
    %v533 = vsel %vm241, %v526, 0.0
    %v534 = vsel %vm241, %v528, 0.0
    %v535 = vsel %vm241, %v530, 0.0
    %v536 = vsel %vm241, %v532, 0.0
    %v537 = vpack.c.bf16 %v534, %v533
    %v538 = vpack.c.bf16 %v536, %v535
    %v539 = vpack.c.bf16 %v522, %v521
    %v540 = vpack.c.bf16 %v524, %v523
    %s541 = scalar_lea.vmem [#allocation2], 64
    %v542 = vld [vmem:[%s541] sm:$0xf]
    %v543 = vld [vmem:[%s541 + $0x4] sm:$0xf]
    %v544 = vld [vmem:[%s541 + $0x8] sm:$0xf]
    %v545 = vld [vmem:[%s541 + $0xc] sm:$0xf]
    %v550 = vunpack.c.l.b16 %v542
    %v551 = vunpack.c.l.b16 %v543
    %v552 = vunpack.c.l.b16 %v544
    %v553 = vunpack.c.l.b16 %v545
    %v554 = vpack.c.b16 %v551, %v550
    %v555 = vpack.c.b16 %v553, %v552
    %v557 = vsel %vm177, %v554, 0
    %v560 = vsel %vm177, %v555, 0
    %562 = vmatprep.subr.bf16.mxu0 0
    %563 = vmatpush1.bf16.msra.mxu0 %v537
    %564 = vmatprep.subr.bf16.mxu0 0
    %565 = vmatpush1.bf16.msra.mxu0 %v538
    %566 = vmatprep.subr.bf16.mxu0 0
    %567 = vmatpush1.bf16.msra.mxu0 %v539
    %568 = vmatprep.subr.bf16.mxu0 0
    %569 = vmatpush1.bf16.msra.mxu0 %v540
    %570 = vmatprep.subr.bf16.mxu0 0
    %571 = vmatpush1.bf16.msra.mxu0 0
    %572 = vmatprep.subr.bf16.mxu0 0
    %573 = vmatpush1.bf16.msra.mxu0 0
    %574 = vmatprep.subr.bf16.mxu0 0
    %575 = vmatpush1.bf16.msra.mxu0 0
    %576 = vmatprep.subr.bf16.mxu0 0
    %577 = vmatpush1.bf16.msra.mxu0 0
    %578 = vmatprep.subr.bf16.mxu0 0
    %579 = vmatpush1.bf16.msra.mxu0 0
    %580 = vmatprep.subr.bf16.mxu0 0
    %581 = vmatpush1.bf16.msra.mxu0 0
    %582 = vmatprep.subr.bf16.mxu0 0
    %583 = vmatpush1.bf16.msra.mxu0 0
    %584 = vmatprep.subr.bf16.mxu0 0
    %585 = vmatpush1.bf16.msra.mxu0 0
    %586 = vmatprep.subr.bf16.mxu0 0
    %587 = vmatpush1.bf16.msra.mxu0 0
    %588 = vmatprep.subr.bf16.mxu0 0
    %589 = vmatpush1.bf16.msra.mxu0 0
    %590 = vmatprep.subr.bf16.mxu0 0
    %591 = vmatpush1.bf16.msra.mxu0 0
    %592 = vmatprep.subr.bf16.mxu0 0
    %593 = vmatpush1.bf16.msra.mxu0 0
    %594 = vmatprep.mubr.bf16.mxu0 0
    %595 = vmatmul.mubr.bf16.gmra.mrb[0].mxu0 %v557
    %v596 = vpop.f32.mrb[0].mxu0
    %v597 = vadd.f32 0.0, %v596
    %v598 = vpop.f32.mrb[0].mxu0
    %v599 = vpop.f32.mrb[0].mxu0
    %v600 = vadd.f32 0.0, %v599
    %v601 = vpop.f32.mrb[0].mxu0
    %602 = vmatprep.mubr.bf16.mxu0 0
    %603 = vmatmul.mubr.bf16.gmra.mrb[0].mxu0 %v560
    %v604 = vpop.f32.mrb[0].mxu0
    %v605 = vadd.f32 0.0, %v604
    %v606 = vpop.f32.mrb[0].mxu0
    %v607 = vpop.f32.mrb[0].mxu0
    %v608 = vadd.f32 0.0, %v607
    %v609 = vpop.f32.mrb[0].mxu0
    %610 = vdwg.mxu0
    %v611 = vmax.f32 %v597, 0.0
    %v612 = vmax.f32 %v600, 0.0
    %v613 = vmax.f32 %v605, 0.0
    %v614 = vmax.f32 %v608, 0.0
    %v615 = vadd.f32 %v521, %v611
    %v616 = vadd.f32 %v522, %v612
    %v617 = vadd.f32 %v523, %v613
    %v618 = vadd.f32 %v524, %v614
    %619 = vrot.lane.b32.xlu0 %v615, 4
    %v620 = vpop.permute.xlu0 %619
    %621 = vrot.lane.b32.xlu0 %v616, 4
    %v622 = vpop.permute.xlu0 %621
    %623 = vrot.lane.b32.xlu0 %v617, 4
    %v624 = vpop.permute.xlu0 %623
    %625 = vrot.lane.b32.xlu0 %v618, 4
    %v626 = vpop.permute.xlu0 %625
    %v627 = vsel %vm336, %v620, 0.0
    %v628 = vsel %vm336, %v622, 0.0
    %v629 = vsel %vm336, %v624, 0.0
    %v630 = vsel %vm336, %v626, 0.0
    %v631 = vpack.c.bf16 %v628, %v627
    %v632 = vpack.c.bf16 %v630, %v629
    %v633 = vpack.c.bf16 %v616, %v615
    %v634 = vpack.c.bf16 %v618, %v617
    %s635 = scalar_lea.vmem [#allocation2], 80
    %v636 = vld [vmem:[%s635] sm:$0xf]
    %v637 = vld [vmem:[%s635 + $0x4] sm:$0xf]
    %v638 = vld [vmem:[%s635 + $0x8] sm:$0xf]
    %v639 = vld [vmem:[%s635 + $0xc] sm:$0xf]
    %v644 = vunpack.c.l.b16 %v636
    %v645 = vunpack.c.l.b16 %v637
    %v646 = vunpack.c.l.b16 %v638
    %v647 = vunpack.c.l.b16 %v639
    %v648 = vpack.c.b16 %v645, %v644
    %v649 = vpack.c.b16 %v647, %v646
    %v651 = vsel %vm177, %v648, 0
    %v654 = vsel %vm177, %v649, 0
    %656 = vmatprep.subr.bf16.mxu0 0
    %657 = vmatpush1.bf16.msra.mxu0 %v631
    %658 = vmatprep.subr.bf16.mxu0 0
    %659 = vmatpush1.bf16.msra.mxu0 %v632
    %660 = vmatprep.subr.bf16.mxu0 0
    %661 = vmatpush1.bf16.msra.mxu0 %v633
    %662 = vmatprep.subr.bf16.mxu0 0
    %663 = vmatpush1.bf16.msra.mxu0 %v634
    %664 = vmatprep.subr.bf16.mxu0 0
    %665 = vmatpush1.bf16.msra.mxu0 0
    %666 = vmatprep.subr.bf16.mxu0 0
    %667 = vmatpush1.bf16.msra.mxu0 0
    %668 = vmatprep.subr.bf16.mxu0 0
    %669 = vmatpush1.bf16.msra.mxu0 0
    %670 = vmatprep.subr.bf16.mxu0 0
    %671 = vmatpush1.bf16.msra.mxu0 0
    %672 = vmatprep.subr.bf16.mxu0 0
    %673 = vmatpush1.bf16.msra.mxu0 0
    %674 = vmatprep.subr.bf16.mxu0 0
    %675 = vmatpush1.bf16.msra.mxu0 0
    %676 = vmatprep.subr.bf16.mxu0 0
    %677 = vmatpush1.bf16.msra.mxu0 0
    %678 = vmatprep.subr.bf16.mxu0 0
    %679 = vmatpush1.bf16.msra.mxu0 0
    %680 = vmatprep.subr.bf16.mxu0 0
    %681 = vmatpush1.bf16.msra.mxu0 0
    %682 = vmatprep.subr.bf16.mxu0 0
    %683 = vmatpush1.bf16.msra.mxu0 0
    %684 = vmatprep.subr.bf16.mxu0 0
    %685 = vmatpush1.bf16.msra.mxu0 0
    %686 = vmatprep.subr.bf16.mxu0 0
    %687 = vmatpush1.bf16.msra.mxu0 0
    %688 = vmatprep.mubr.bf16.mxu0 0
    %689 = vmatmul.mubr.bf16.gmra.mrb[0].mxu0 %v651
    %v690 = vpop.f32.mrb[0].mxu0
    %v691 = vadd.f32 0.0, %v690
    %v692 = vpop.f32.mrb[0].mxu0
    %v693 = vpop.f32.mrb[0].mxu0
    %v694 = vadd.f32 0.0, %v693
    %v695 = vpop.f32.mrb[0].mxu0
    %696 = vmatprep.mubr.bf16.mxu0 0
    %697 = vmatmul.mubr.bf16.gmra.mrb[0].mxu0 %v654
    %v698 = vpop.f32.mrb[0].mxu0
    %v699 = vadd.f32 0.0, %v698
    %v700 = vpop.f32.mrb[0].mxu0
    %v701 = vpop.f32.mrb[0].mxu0
    %v702 = vadd.f32 0.0, %v701
    %v703 = vpop.f32.mrb[0].mxu0
    %704 = vdwg.mxu0
    %v705 = vmax.f32 %v691, 0.0
    %v706 = vmax.f32 %v694, 0.0
    %v707 = vmax.f32 %v699, 0.0
    %v708 = vmax.f32 %v702, 0.0
    %v709 = vadd.f32 %v615, %v705
    %v710 = vadd.f32 %v616, %v706
    %v711 = vadd.f32 %v617, %v707
    %v712 = vadd.f32 %v618, %v708
    %v713 = vld [vmem:[%s3] sm:$0xf]
    %v714 = vld [vmem:[%s3 + $0x4] sm:$0xf]
    %v715 = vpack.c.bf16 %v710, %v709
    %v716 = vpack.c.bf16 %v712, %v711
    %v719 = vunpack.c.l.b16 %v713
    %v720 = vunpack.c.l.b16 %v714
    %v721 = vpack.c.b16 %v720, %v719
    %vm722 = vcmask 261120
    %v724 = vsel %vm722, %v721, 0
    %726 = vmatprep.subr.bf16.mxu0 0
    %727 = vmatpush1.bf16.msra.mxu0 %v715
    %728 = vmatprep.subr.bf16.mxu0 0
    %729 = vmatpush1.bf16.msra.mxu0 %v716
    %730 = vmatprep.subr.bf16.mxu0 0
    %731 = vmatpush1.bf16.msra.mxu0 0
    %732 = vmatprep.subr.bf16.mxu0 0
    %733 = vmatpush1.bf16.msra.mxu0 0
    %734 = vmatprep.subr.bf16.mxu0 0
    %735 = vmatpush1.bf16.msra.mxu0 0
    %736 = vmatprep.subr.bf16.mxu0 0
    %737 = vmatpush1.bf16.msra.mxu0 0
    %738 = vmatprep.subr.bf16.mxu0 0
    %739 = vmatpush1.bf16.msra.mxu0 0
    %740 = vmatprep.subr.bf16.mxu0 0
    %741 = vmatpush1.bf16.msra.mxu0 0
    %742 = vmatprep.subr.bf16.mxu0 0
    %743 = vmatpush1.bf16.msra.mxu0 0
    %744 = vmatprep.subr.bf16.mxu0 0
    %745 = vmatpush1.bf16.msra.mxu0 0
    %746 = vmatprep.subr.bf16.mxu0 0
    %747 = vmatpush1.bf16.msra.mxu0 0
    %748 = vmatprep.subr.bf16.mxu0 0
    %749 = vmatpush1.bf16.msra.mxu0 0
    %750 = vmatprep.subr.bf16.mxu0 0
    %751 = vmatpush1.bf16.msra.mxu0 0
    %752 = vmatprep.subr.bf16.mxu0 0
    %753 = vmatpush1.bf16.msra.mxu0 0
    %754 = vmatprep.subr.bf16.mxu0 0
    %755 = vmatpush1.bf16.msra.mxu0 0
    %756 = vmatprep.subr.bf16.mxu0 0
    %757 = vmatpush1.bf16.msra.mxu0 0
    %758 = vmatprep.mubr.bf16.mxu0 0
    %759 = vmatmul.mubr.bf16.gmra.mrb[0].mxu0 %v724
    %v760 = vpop.f32.mrb[0].mxu0
    %v761 = vadd.f32 0.0, %v760
    %v762 = vpop.f32.mrb[0].mxu0
    %v763 = vpop.f32.mrb[0].mxu0
    %v764 = vadd.f32 0.0, %v763
    %v765 = vpop.f32.mrb[0].mxu0
    %766 = vdwg.mxu0
    %767 = vst [vmem:[%s4] sm:$0xff] %v761
    %768 = vst [vmem:[%s4 + $0x8] sm:$0xff] %v764
    // Predicated region
    $region22: #{_forward_impl.2} parent=1 // pred_check
      _
    $region23: #{_forward_impl.2} parent=1 // pred_check_branch
      %770 = sbr.rel (0) target = $region25
    $region24: #{_forward_impl.2} parent=1 // pred_region
      _
    $region25: #{_forward_impl.2} parent=1 // pred_fallthru
      _
    // Predicated region
    $region26: #{_forward_impl.2} parent=1 // pred_check
      _
    $region27: #{_forward_impl.2} parent=1 // pred_check_branch
      %772 = sbr.rel (0) target = $region29
    $region28: #{_forward_impl.2} parent=1 // pred_region
      _
    $region29: #{_forward_impl.2} parent=1 // pred_fallthru
      _
    %773 = vsyncpa [#allocation3], 1

// kernel: _forward_impl.3
$region0: #{_forward_impl.3}
  #allocation0 [shape = 'u32[]', space=smem, size = 0x4, offset = 0x4, fixed_abs, tag = 'smem constant byte address 0x4 - core index']
  #allocation1 [shape = 'u32[144,128]{1,0:T(1,128)}', space=vmem, size = 0x12000, scoped, tag = 'internal scratch']
  %s0 = inlined_call_operand.vmem [shape: f32[1,1,128], index: 0, kind: input, shape index: {}]
  %s1 = inlined_call_operand.vmem [shape: f32[1,16,128], index: 1, kind: input, shape index: {}]
  %s2 = inlined_call_operand.vmem [shape: f32[16,1], index: 2, kind: input, shape index: {}]
  %s3 = inlined_call_operand.vmem [shape: bf16[6,32,48], index: 3, kind: input, shape index: {}]
  %s4 = inlined_call_operand.vmem [shape: bf16[6,48,16], index: 4, kind: input, shape index: {}]
  %s5 = inlined_call_operand.vmem [shape: bf16[32,32], index: 5, kind: input, shape index: {}]
  %s6 = inlined_call_operand.vmem [shape: bf16[32,32], index: 6, kind: input, shape index: {}]
  %s7 = inlined_call_operand.vmem [shape: f32[1,32,128], index: 7, kind: output, shape index: {}]
  %s8 = sld [smem:[#allocation0]]
  $region38: #{_forward_impl.3} parent=0
    _
  %s10 = ssub.s32 1, %s8
  %s11 = scalar_select 0, %s10, %s8
  // Predicated region
  $region2: #{_forward_impl.3} parent=0 // pred_check
    _
  $region3: #{_forward_impl.3} parent=0 // pred_check_branch
    %13 = sbr.rel (0) target = $region5
  $region4: #{_forward_impl.3} parent=0 // pred_region
    _
  $region5: #{_forward_impl.3} parent=0 // pred_fallthru
    _
  // Predicated region
  $region6: #{_forward_impl.3} parent=0 // pred_check
    _
  $region7: #{_forward_impl.3} parent=0 // pred_check_branch
    %15 = sbr.rel (0) target = $region9
  $region8: #{_forward_impl.3} parent=0 // pred_region
    _
  $region9: #{_forward_impl.3} parent=0 // pred_fallthru
    _
  // Predicated region
  $region10: #{_forward_impl.3} parent=0 // pred_check
    _
  $region11: #{_forward_impl.3} parent=0 // pred_check_branch
    %17 = sbr.rel (0) target = $region13
  $region12: #{_forward_impl.3} parent=0 // pred_region
    _
  $region13: #{_forward_impl.3} parent=0 // pred_fallthru
    _
  // Predicated region
  $region14: #{_forward_impl.3} parent=0 // pred_check
    _
  $region15: #{_forward_impl.3} parent=0 // pred_check_branch
    %19 = sbr.rel (0) target = $region17
  $region16: #{_forward_impl.3} parent=0 // pred_region
    _
  $region17: #{_forward_impl.3} parent=0 // pred_fallthru
    _
  // Predicated region
  $region18: #{_forward_impl.3} parent=0 // pred_check
    _
  $region19: #{_forward_impl.3} parent=0 // pred_check_branch
    %21 = sbr.rel (0) target = $region21
  $region20: #{_forward_impl.3} parent=0 // pred_region
    _
  $region21: #{_forward_impl.3} parent=0 // pred_fallthru
    _
  // Predicated region
  $region22: #{_forward_impl.3} parent=0 // pred_check
    _
  $region23: #{_forward_impl.3} parent=0 // pred_check_branch
    %23 = sbr.rel (0) target = $region25
  $region24: #{_forward_impl.3} parent=0 // pred_region
    _
  $region25: #{_forward_impl.3} parent=0 // pred_fallthru
    _
  // Predicated region
  $region26: #{_forward_impl.3} parent=0 // pred_check
    _
  $region27: #{_forward_impl.3} parent=0 // pred_check_branch
    %25 = sbr.rel (0) target = $region29
  $region28: #{_forward_impl.3} parent=0 // pred_region
    _
  $region29: #{_forward_impl.3} parent=0 // pred_fallthru
    _
  %v27 = vld [vmem:[%s0] sm:$0x1]
  %v28 = vld [vmem:[%s1] sm:$0xff]
  %v29 = vld [vmem:[%s1 + $0x8] sm:$0xff]
  %v30 = vld [vmem:[%s2] sm:$0xff]
  %v31 = vld [vmem:[%s2 + $0x8] sm:$0xff]
  %vm32 = vcmask 7168
  %v34 = vsel %vm32, %v30, 0
  %v37 = vsel %vm32, %v31, 0
  %vm39 = vcmask 1040384
  %v41 = vsel %vm39, %v27, 0
  %43 = vmatprep.subr.mxu0 0.0
  %44 = vmatpush1.msra.mxu0 %v41
  %45 = vmatprep.subr.mxu0 0.0
  %46 = vmatpush1.msra.mxu0 0.0
  %47 = vmatprep.subr.mxu0 0.0
  %48 = vmatpush1.msra.mxu0 0.0
  %49 = vmatprep.subr.mxu0 0.0
  %50 = vmatpush1.msra.mxu0 0.0
  %51 = vmatprep.subr.mxu0 0.0
  %52 = vmatpush1.msra.mxu0 0.0
  %53 = vmatprep.subr.mxu0 0.0
  %54 = vmatpush1.msra.mxu0 0.0
  %55 = vmatprep.subr.mxu0 0.0
  %56 = vmatpush1.msra.mxu0 0.0
  %57 = vmatprep.subr.mxu0 0.0
  %58 = vmatpush1.msra.mxu0 0.0
  %59 = vmatprep.subr.mxu0 0.0
  %60 = vmatpush1.msra.mxu0 0.0
  %61 = vmatprep.subr.mxu0 0.0
  %62 = vmatpush1.msra.mxu0 0.0
  %63 = vmatprep.subr.mxu0 0.0
  %64 = vmatpush1.msra.mxu0 0.0
  %65 = vmatprep.subr.mxu0 0.0
  %66 = vmatpush1.msra.mxu0 0.0
  %67 = vmatprep.subr.mxu0 0.0
  %68 = vmatpush1.msra.mxu0 0.0
  %69 = vmatprep.subr.mxu0 0.0
  %70 = vmatpush1.msra.mxu0 0.0
  %71 = vmatprep.subr.mxu0 0.0
  %72 = vmatpush1.msra.mxu0 0.0
  %73 = vmatprep.subr.mxu0 0.0
  %74 = vmatpush1.msra.mxu0 0.0
  %75 = vmatprep.subr.mxu0 0.0
  %76 = vmatpush1.msra.mxu0 0.0
  %77 = vmatprep.subr.mxu0 0.0
  %78 = vmatpush1.msra.mxu0 0.0
  %79 = vmatprep.subr.mxu0 0.0
  %80 = vmatpush1.msra.mxu0 0.0
  %81 = vmatprep.subr.mxu0 0.0
  %82 = vmatpush1.msra.mxu0 0.0
  %83 = vmatprep.subr.mxu0 0.0
  %84 = vmatpush1.msra.mxu0 0.0
  %85 = vmatprep.subr.mxu0 0.0
  %86 = vmatpush1.msra.mxu0 0.0
  %87 = vmatprep.subr.mxu0 0.0
  %88 = vmatpush1.msra.mxu0 0.0
  %89 = vmatprep.subr.mxu0 0.0
  %90 = vmatpush1.msra.mxu0 0.0
  %91 = vmatprep.subr.mxu0 0.0
  %92 = vmatpush1.msra.mxu0 0.0
  %93 = vmatprep.subr.mxu0 0.0
  %94 = vmatpush1.msra.mxu0 0.0
  %95 = vmatprep.subr.mxu0 0.0
  %96 = vmatpush1.msra.mxu0 0.0
  %97 = vmatprep.subr.mxu0 0.0
  %98 = vmatpush1.msra.mxu0 0.0
  %99 = vmatprep.subr.mxu0 0.0
  %100 = vmatpush1.msra.mxu0 0.0
  %101 = vmatprep.subr.mxu0 0.0
  %102 = vmatpush1.msra.mxu0 0.0
  %103 = vmatprep.subr.mxu0 0.0
  %104 = vmatpush1.msra.mxu0 0.0
  %105 = vmatprep.subr.mxu0 0.0
  %106 = vmatpush1.msra.mxu0 0.0
  %107 = vmatprep.mubr.f32.mxu0 0.0
  %108 = vmatmul.mubr.f32.gmra.mrb[0].mxu0 %v34
  %v109 = vpop.f32.mrb[0].mxu0
  %v110 = vadd.f32 0.0, %v109
  %v111 = vpop.f32.mrb[0].mxu0
  %112 = vmatprep.mubr.f32.mxu0 0.0
  %113 = vmatmul.mubr.f32.gmra.mrb[0].mxu0 %v37
  %v114 = vpop.f32.mrb[0].mxu0
  %v115 = vadd.f32 0.0, %v114
  %v116 = vpop.f32.mrb[0].mxu0
  %117 = vdwg.mxu0
  %v118 = vlaneseq
  %v119 = vand.u32 %v118, 127
  %v120 = vand.u32 %v119, 63
  %vm121 = vcmp.ge.s32.totalorder %v120, 1
  %122 = vrot.lane.b32.xlu0 %v110, 1
  %v123 = vpop.permute.xlu0 %122
  %124 = vrot.lane.b32.xlu0 %v115, 1
  %v125 = vpop.permute.xlu0 %124
  %v126 = vsel %vm121, %v123, 0.0
  %v127 = vsel %vm121, %v125, 0.0
  %v128 = vpack.c.bf16 %v127, %v126
  %v129 = vpack.c.bf16 %v115, %v110
  %v130 = vpack.c.bf16 %v29, %v28
  %v131 = vld [vmem:[%s3] sm:$0xf]
  %v132 = vld [vmem:[%s3 + $0x4] sm:$0xf]
  %v133 = vld [vmem:[%s3 + $0x8] sm:$0xf]
  %v134 = vld [vmem:[%s3 + $0xc] sm:$0xf]
  %v139 = vunpack.c.l.b16 %v131
  %v140 = vunpack.c.l.b16 %v132
  %v141 = vunpack.c.l.b16 %v133
  %v142 = vunpack.c.l.b16 %v134
  %v143 = vpack.c.b16 %v140, %v139
  %v144 = vpack.c.b16 %v142, %v141
  %vm145 = vcmask 392192
  %v147 = vsel %vm145, %v143, 0
  %v150 = vsel %vm145, %v144, 0
  %152 = vmatprep.subr.bf16.mxu0 0
  %153 = vmatpush1.bf16.msra.mxu0 %v128
  %154 = vmatprep.subr.bf16.mxu0 0
  %155 = vmatpush1.bf16.msra.mxu0 %v129
  %156 = vmatprep.subr.bf16.mxu0 0
  %157 = vmatpush1.bf16.msra.mxu0 %v130
  %158 = vmatprep.subr.bf16.mxu0 0
  %159 = vmatpush1.bf16.msra.mxu0 0
  %160 = vmatprep.subr.bf16.mxu0 0
  %161 = vmatpush1.bf16.msra.mxu0 0
  %162 = vmatprep.subr.bf16.mxu0 0
  %163 = vmatpush1.bf16.msra.mxu0 0
  %164 = vmatprep.subr.bf16.mxu0 0
  %165 = vmatpush1.bf16.msra.mxu0 0
  %166 = vmatprep.subr.bf16.mxu0 0
  %167 = vmatpush1.bf16.msra.mxu0 0
  %168 = vmatprep.subr.bf16.mxu0 0
  %169 = vmatpush1.bf16.msra.mxu0 0
  %170 = vmatprep.subr.bf16.mxu0 0
  %171 = vmatpush1.bf16.msra.mxu0 0
  %172 = vmatprep.subr.bf16.mxu0 0
  %173 = vmatpush1.bf16.msra.mxu0 0
  %174 = vmatprep.subr.bf16.mxu0 0
  %175 = vmatpush1.bf16.msra.mxu0 0
  %176 = vmatprep.subr.bf16.mxu0 0
  %177 = vmatpush1.bf16.msra.mxu0 0
  %178 = vmatprep.subr.bf16.mxu0 0
  %179 = vmatpush1.bf16.msra.mxu0 0
  %180 = vmatprep.subr.bf16.mxu0 0
  %181 = vmatpush1.bf16.msra.mxu0 0
  %182 = vmatprep.subr.bf16.mxu0 0
  %183 = vmatpush1.bf16.msra.mxu0 0
  %184 = vmatprep.mubr.bf16.mxu0 0
  %185 = vmatmul.mubr.bf16.gmra.mrb[0].mxu0 %v147
  %v186 = vpop.f32.mrb[0].mxu0
  %v187 = vadd.f32 0.0, %v186
  %v188 = vpop.f32.mrb[0].mxu0
  %v189 = vpop.f32.mrb[0].mxu0
  %v190 = vadd.f32 0.0, %v189
  %v191 = vpop.f32.mrb[0].mxu0
  %192 = vmatprep.mubr.bf16.mxu0 0
  %193 = vmatmul.mubr.bf16.gmra.mrb[0].mxu0 %v150
  %v194 = vpop.f32.mrb[0].mxu0
  %v195 = vadd.f32 0.0, %v194
  %v196 = vpop.f32.mrb[0].mxu0
  %v197 = vpop.f32.mrb[0].mxu0
  %v198 = vadd.f32 0.0, %v197
  %v199 = vpop.f32.mrb[0].mxu0
  %200 = vdwg.mxu0
  %v201 = vtanh.pop %v187
  %v202 = vtanh.pop %v190
  %v203 = vxor.u32 %v195, 2147483648
  %v204 = vxor.u32 %v198, 2147483648
  %v205 = vmul.f32 %v203, 1.442695
  %v206 = vpow.pop %v205
  %v207 = vmul.f32 %v204, 1.442695
  %v208 = vpow.pop %v207
  %v209 = vadd.f32 %v206, 1.0
  %v210 = vadd.f32 %v208, 1.0
  %v211 = vrcp.pop %v209
  %v212 = vmul.f32 1.0, %v211
  %v213 = vrcp.pop %v210
  %v214 = vmul.f32 1.0, %v213
  %v215 = vmul.f32 %v201, %v212
  %v216 = vmul.f32 %v202, %v214
  %v217 = vpack.c.bf16 %v216, %v215
  %v218 = vld [vmem:[%s4] sm:$0xf]
  %v219 = vld [vmem:[%s4 + $0x4] sm:$0xf]
  %v220 = vld [vmem:[%s4 + $0x8] sm:$0xf]
  %v221 = vld [vmem:[%s4 + $0xc] sm:$0xf]
  %v222 = vld [vmem:[%s4 + $0x10] sm:$0xf]
  %v223 = vld [vmem:[%s4 + $0x14] sm:$0xf]
  %v230 = vunpack.c.l.b16 %v218
  %v231 = vunpack.c.l.b16 %v219
  %v232 = vunpack.c.l.b16 %v220
  %v233 = vunpack.c.l.b16 %v221
  %v234 = vunpack.c.l.b16 %v222
  %v235 = vunpack.c.l.b16 %v223
  %v236 = vpack.c.b16 %v231, %v230
  %v237 = vpack.c.b16 %v233, %v232
  %v238 = vpack.c.b16 %v235, %v234
  %vm239 = vcmask 130048
  %v241 = vsel %vm239, %v236, 0
  %v244 = vsel %vm239, %v237, 0
  %v247 = vsel %vm239, %v238, 0
  %249 = vmatprep.subr.bf16.mxu0 0
  %250 = vmatpush1.bf16.msra.mxu0 %v217
  %251 = vmatprep.subr.bf16.mxu0 0
  %252 = vmatpush1.bf16.msra.mxu0 0
  %253 = vmatprep.subr.bf16.mxu0 0
  %254 = vmatpush1.bf16.msra.mxu0 0
  %255 = vmatprep.subr.bf16.mxu0 0
  %256 = vmatpush1.bf16.msra.mxu0 0
  %257 = vmatprep.subr.bf16.mxu0 0
  %258 = vmatpush1.bf16.msra.mxu0 0
  %259 = vmatprep.subr.bf16.mxu0 0
  %260 = vmatpush1.bf16.msra.mxu0 0
  %261 = vmatprep.subr.bf16.mxu0 0
  %262 = vmatpush1.bf16.msra.mxu0 0
  %263 = vmatprep.subr.bf16.mxu0 0
  %264 = vmatpush1.bf16.msra.mxu0 0
  %265 = vmatprep.subr.bf16.mxu0 0
  %266 = vmatpush1.bf16.msra.mxu0 0
  %267 = vmatprep.subr.bf16.mxu0 0
  %268 = vmatpush1.bf16.msra.mxu0 0
  %269 = vmatprep.subr.bf16.mxu0 0
  %270 = vmatpush1.bf16.msra.mxu0 0
  %271 = vmatprep.subr.bf16.mxu0 0
  %272 = vmatpush1.bf16.msra.mxu0 0
  %273 = vmatprep.subr.bf16.mxu0 0
  %274 = vmatpush1.bf16.msra.mxu0 0
  %275 = vmatprep.subr.bf16.mxu0 0
  %276 = vmatpush1.bf16.msra.mxu0 0
  %277 = vmatprep.subr.bf16.mxu0 0
  %278 = vmatpush1.bf16.msra.mxu0 0
  %279 = vmatprep.subr.bf16.mxu0 0
  %280 = vmatpush1.bf16.msra.mxu0 0
  %281 = vmatprep.mubr.bf16.mxu0 0
  %282 = vmatmul.mubr.bf16.gmra.mrb[0].mxu0 %v241
  %v283 = vpop.f32.mrb[0].mxu0
  %v284 = vadd.f32 0.0, %v283
  %v285 = vpop.f32.mrb[0].mxu0
  %v286 = vpop.f32.mrb[0].mxu0
  %v287 = vadd.f32 0.0, %v286
  %v288 = vpop.f32.mrb[0].mxu0
  %289 = vmatprep.mubr.bf16.mxu0 0
  %290 = vmatmul.mubr.bf16.gmra.mrb[0].mxu0 %v244
  %v291 = vpop.f32.mrb[0].mxu0
  %v292 = vadd.f32 0.0, %v291
  %v293 = vpop.f32.mrb[0].mxu0
  %v294 = vpop.f32.mrb[0].mxu0
  %v295 = vadd.f32 0.0, %v294
  %v296 = vpop.f32.mrb[0].mxu0
  %297 = vmatprep.mubr.bf16.mxu0 0
  %298 = vmatmul.mubr.bf16.gmra.mrb[0].mxu0 %v247
  %v299 = vpop.f32.mrb[0].mxu0
  %v300 = vadd.f32 0.0, %v299
  %v301 = vpop.f32.mrb[0].mxu0
  %v302 = vpop.f32.mrb[0].mxu0
  %v303 = vadd.f32 0.0, %v302
  %v304 = vpop.f32.mrb[0].mxu0
  %305 = vdwg.mxu0
  %v306 = vadd.f32 %v110, %v284
  %v307 = vadd.f32 %v115, %v287
  %v308 = vadd.f32 %v292, 0.0
  %v309 = vadd.f32 %v295, 0.0
  %v310 = vadd.f32 %v300, 0.0
  %v311 = vadd.f32 %v303, 0.0
  %vm312 = vcmp.ge.s32.totalorder %v120, 2
  %313 = vrot.lane.b32.xlu0 %v306, 2
  %v314 = vpop.permute.xlu0 %313
  %315 = vrot.lane.b32.xlu0 %v307, 2
  %v316 = vpop.permute.xlu0 %315
  %v317 = vsel %vm312, %v314, 0.0
  %v318 = vsel %vm312, %v316, 0.0
  %v319 = vpack.c.bf16 %v318, %v317
  %v320 = vpack.c.bf16 %v307, %v306
  %s321 = scalar_lea.vmem %s3, 16
  %v322 = vld [vmem:[%s321] sm:$0xf]
  %v323 = vld [vmem:[%s321 + $0x4] sm:$0xf]
  %v324 = vld [vmem:[%s321 + $0x8] sm:$0xf]
  %v325 = vld [vmem:[%s321 + $0xc] sm:$0xf]
  %v330 = vunpack.c.l.b16 %v322
  %v331 = vunpack.c.l.b16 %v323
  %v332 = vunpack.c.l.b16 %v324
  %v333 = vunpack.c.l.b16 %v325
  %v334 = vpack.c.b16 %v331, %v330
  %v335 = vpack.c.b16 %v333, %v332
  %v337 = vsel %vm145, %v334, 0
  %v340 = vsel %vm145, %v335, 0
  %342 = vmatprep.subr.bf16.mxu0 0
  %343 = vmatpush1.bf16.msra.mxu0 %v319
  %344 = vmatprep.subr.bf16.mxu0 0
  %345 = vmatpush1.bf16.msra.mxu0 %v320
  %346 = vmatprep.subr.bf16.mxu0 0
  %347 = vmatpush1.bf16.msra.mxu0 %v130
  %348 = vmatprep.subr.bf16.mxu0 0
  %349 = vmatpush1.bf16.msra.mxu0 0
  %350 = vmatprep.subr.bf16.mxu0 0
  %351 = vmatpush1.bf16.msra.mxu0 0
  %352 = vmatprep.subr.bf16.mxu0 0
  %353 = vmatpush1.bf16.msra.mxu0 0
  %354 = vmatprep.subr.bf16.mxu0 0
  %355 = vmatpush1.bf16.msra.mxu0 0
  %356 = vmatprep.subr.bf16.mxu0 0
  %357 = vmatpush1.bf16.msra.mxu0 0
  %358 = vmatprep.subr.bf16.mxu0 0
  %359 = vmatpush1.bf16.msra.mxu0 0
  %360 = vmatprep.subr.bf16.mxu0 0
  %361 = vmatpush1.bf16.msra.mxu0 0
  %362 = vmatprep.subr.bf16.mxu0 0
  %363 = vmatpush1.bf16.msra.mxu0 0
  %364 = vmatprep.subr.bf16.mxu0 0
  %365 = vmatpush1.bf16.msra.mxu0 0
  %366 = vmatprep.subr.bf16.mxu0 0
  %367 = vmatpush1.bf16.msra.mxu0 0
  %368 = vmatprep.subr.bf16.mxu0 0
  %369 = vmatpush1.bf16.msra.mxu0 0
  %370 = vmatprep.subr.bf16.mxu0 0
  %371 = vmatpush1.bf16.msra.mxu0 0
  %372 = vmatprep.subr.bf16.mxu0 0
  %373 = vmatpush1.bf16.msra.mxu0 0
  %374 = vmatprep.mubr.bf16.mxu0 0
  %375 = vmatmul.mubr.bf16.gmra.mrb[0].mxu0 %v337
  %v376 = vpop.f32.mrb[0].mxu0
  %v377 = vadd.f32 0.0, %v376
  %v378 = vpop.f32.mrb[0].mxu0
  %v379 = vpop.f32.mrb[0].mxu0
  %v380 = vadd.f32 0.0, %v379
  %v381 = vpop.f32.mrb[0].mxu0
  %382 = vmatprep.mubr.bf16.mxu0 0
  %383 = vmatmul.mubr.bf16.gmra.mrb[0].mxu0 %v340
  %v384 = vpop.f32.mrb[0].mxu0
  %v385 = vadd.f32 0.0, %v384
  %v386 = vpop.f32.mrb[0].mxu0
  %v387 = vpop.f32.mrb[0].mxu0
  %v388 = vadd.f32 0.0, %v387
  %v389 = vpop.f32.mrb[0].mxu0
  %390 = vdwg.mxu0
  %v391 = vtanh.pop %v377
  %v392 = vtanh.pop %v380
  %v393 = vxor.u32 %v385, 2147483648
  %v394 = vxor.u32 %v388, 2147483648
  %v395 = vmul.f32 %v393, 1.442695
  %v396 = vpow.pop %v395
  %v397 = vmul.f32 %v394, 1.442695
  %v398 = vpow.pop %v397
  %v399 = vadd.f32 %v396, 1.0
  %v400 = vadd.f32 %v398, 1.0
  %v401 = vrcp.pop %v399
  %v402 = vmul.f32 1.0, %v401
  %v403 = vrcp.pop %v400
  %v404 = vmul.f32 1.0, %v403
  %v405 = vmul.f32 %v391, %v402
  %v406 = vmul.f32 %v392, %v404
  %v407 = vpack.c.bf16 %v406, %v405
  %s408 = scalar_lea.vmem %s4, 24
  %v409 = vld [vmem:[%s408] sm:$0xf]
  %v410 = vld [vmem:[%s408 + $0x4] sm:$0xf]
  %v411 = vld [vmem:[%s408 + $0x8] sm:$0xf]
  %v412 = vld [vmem:[%s408 + $0xc] sm:$0xf]
  %v413 = vld [vmem:[%s408 + $0x10] sm:$0xf]
  %v414 = vld [vmem:[%s408 + $0x14] sm:$0xf]
  %v421 = vunpack.c.l.b16 %v409
  %v422 = vunpack.c.l.b16 %v410
  %v423 = vunpack.c.l.b16 %v411
  %v424 = vunpack.c.l.b16 %v412
  %v425 = vunpack.c.l.b16 %v413
  %v426 = vunpack.c.l.b16 %v414
  %v427 = vpack.c.b16 %v422, %v421
  %v428 = vpack.c.b16 %v424, %v423
  %v429 = vpack.c.b16 %v426, %v425
  %v431 = vsel %vm239, %v427, 0
  %v434 = vsel %vm239, %v428, 0
  %v437 = vsel %vm239, %v429, 0
  %439 = vmatprep.subr.bf16.mxu0 0
  %440 = vmatpush1.bf16.msra.mxu0 %v407
  %441 = vmatprep.subr.bf16.mxu0 0
  %442 = vmatpush1.bf16.msra.mxu0 0
  %443 = vmatprep.subr.bf16.mxu0 0
  %444 = vmatpush1.bf16.msra.mxu0 0
  %445 = vmatprep.subr.bf16.mxu0 0
  %446 = vmatpush1.bf16.msra.mxu0 0
  %447 = vmatprep.subr.bf16.mxu0 0
  %448 = vmatpush1.bf16.msra.mxu0 0
  %449 = vmatprep.subr.bf16.mxu0 0
  %450 = vmatpush1.bf16.msra.mxu0 0
  %451 = vmatprep.subr.bf16.mxu0 0
  %452 = vmatpush1.bf16.msra.mxu0 0
  %453 = vmatprep.subr.bf16.mxu0 0
  %454 = vmatpush1.bf16.msra.mxu0 0
  %455 = vmatprep.subr.bf16.mxu0 0
  %456 = vmatpush1.bf16.msra.mxu0 0
  %457 = vmatprep.subr.bf16.mxu0 0
  %458 = vmatpush1.bf16.msra.mxu0 0
  %459 = vmatprep.subr.bf16.mxu0 0
  %460 = vmatpush1.bf16.msra.mxu0 0
  %461 = vmatprep.subr.bf16.mxu0 0
  %462 = vmatpush1.bf16.msra.mxu0 0
  %463 = vmatprep.subr.bf16.mxu0 0
  %464 = vmatpush1.bf16.msra.mxu0 0
  %465 = vmatprep.subr.bf16.mxu0 0
  %466 = vmatpush1.bf16.msra.mxu0 0
  %467 = vmatprep.subr.bf16.mxu0 0
  %468 = vmatpush1.bf16.msra.mxu0 0
  %469 = vmatprep.subr.bf16.mxu0 0
  %470 = vmatpush1.bf16.msra.mxu0 0
  %471 = vmatprep.mubr.bf16.mxu0 0
  %472 = vmatmul.mubr.bf16.gmra.mrb[0].mxu0 %v431
  %v473 = vpop.f32.mrb[0].mxu0
  %v474 = vadd.f32 0.0, %v473
  %v475 = vpop.f32.mrb[0].mxu0
  %v476 = vpop.f32.mrb[0].mxu0
  %v477 = vadd.f32 0.0, %v476
  %v478 = vpop.f32.mrb[0].mxu0
  %479 = vmatprep.mubr.bf16.mxu0 0
  %480 = vmatmul.mubr.bf16.gmra.mrb[0].mxu0 %v434
  %v481 = vpop.f32.mrb[0].mxu0
  %v482 = vadd.f32 0.0, %v481
  %v483 = vpop.f32.mrb[0].mxu0
  %v484 = vpop.f32.mrb[0].mxu0
  %v485 = vadd.f32 0.0, %v484
  %v486 = vpop.f32.mrb[0].mxu0
  %487 = vmatprep.mubr.bf16.mxu0 0
  %488 = vmatmul.mubr.bf16.gmra.mrb[0].mxu0 %v437
  %v489 = vpop.f32.mrb[0].mxu0
  %v490 = vadd.f32 0.0, %v489
  %v491 = vpop.f32.mrb[0].mxu0
  %v492 = vpop.f32.mrb[0].mxu0
  %v493 = vadd.f32 0.0, %v492
  %v494 = vpop.f32.mrb[0].mxu0
  %495 = vdwg.mxu0
  %v496 = vadd.f32 %v306, %v474
  %v497 = vadd.f32 %v307, %v477
  %v498 = vadd.f32 %v308, %v482
  %v499 = vadd.f32 %v309, %v485
  %v500 = vadd.f32 %v310, %v490
  %v501 = vadd.f32 %v311, %v493
  %vm502 = vcmp.ge.s32.totalorder %v120, 4
  %503 = vrot.lane.b32.xlu0 %v496, 4
  %v504 = vpop.permute.xlu0 %503
  %505 = vrot.lane.b32.xlu0 %v497, 4
  %v506 = vpop.permute.xlu0 %505
  %v507 = vsel %vm502, %v504, 0.0
  %v508 = vsel %vm502, %v506, 0.0
  %v509 = vpack.c.bf16 %v508, %v507
  %v510 = vpack.c.bf16 %v497, %v496
  %s511 = scalar_lea.vmem %s3, 32
  %v512 = vld [vmem:[%s511] sm:$0xf]
  %v513 = vld [vmem:[%s511 + $0x4] sm:$0xf]
  %v514 = vld [vmem:[%s511 + $0x8] sm:$0xf]
  %v515 = vld [vmem:[%s511 + $0xc] sm:$0xf]
  %v520 = vunpack.c.l.b16 %v512
  %v521 = vunpack.c.l.b16 %v513
  %v522 = vunpack.c.l.b16 %v514
  %v523 = vunpack.c.l.b16 %v515
  %v524 = vpack.c.b16 %v521, %v520
  %v525 = vpack.c.b16 %v523, %v522
  %v527 = vsel %vm145, %v524, 0
  %v530 = vsel %vm145, %v525, 0
  %532 = vmatprep.subr.bf16.mxu0 0
  %533 = vmatpush1.bf16.msra.mxu0 %v509
  %534 = vmatprep.subr.bf16.mxu0 0
  %535 = vmatpush1.bf16.msra.mxu0 %v510
  %536 = vmatprep.subr.bf16.mxu0 0
  %537 = vmatpush1.bf16.msra.mxu0 %v130
  %538 = vmatprep.subr.bf16.mxu0 0
  %539 = vmatpush1.bf16.msra.mxu0 0
  %540 = vmatprep.subr.bf16.mxu0 0
  %541 = vmatpush1.bf16.msra.mxu0 0
  %542 = vmatprep.subr.bf16.mxu0 0
  %543 = vmatpush1.bf16.msra.mxu0 0
  %544 = vmatprep.subr.bf16.mxu0 0
  %545 = vmatpush1.bf16.msra.mxu0 0
  %546 = vmatprep.subr.bf16.mxu0 0
  %547 = vmatpush1.bf16.msra.mxu0 0
  %548 = vmatprep.subr.bf16.mxu0 0
  %549 = vmatpush1.bf16.msra.mxu0 0
  %550 = vmatprep.subr.bf16.mxu0 0
  %551 = vmatpush1.bf16.msra.mxu0 0
  %552 = vmatprep.subr.bf16.mxu0 0
  %553 = vmatpush1.bf16.msra.mxu0 0
  %554 = vmatprep.subr.bf16.mxu0 0
  %555 = vmatpush1.bf16.msra.mxu0 0
  %556 = vmatprep.subr.bf16.mxu0 0
  %557 = vmatpush1.bf16.msra.mxu0 0
  %558 = vmatprep.subr.bf16.mxu0 0
  %559 = vmatpush1.bf16.msra.mxu0 0
  %560 = vmatprep.subr.bf16.mxu0 0
  %561 = vmatpush1.bf16.msra.mxu0 0
  %562 = vmatprep.subr.bf16.mxu0 0
  %563 = vmatpush1.bf16.msra.mxu0 0
  %564 = vmatprep.mubr.bf16.mxu0 0
  %565 = vmatmul.mubr.bf16.gmra.mrb[0].mxu0 %v527
  %v566 = vpop.f32.mrb[0].mxu0
  %v567 = vadd.f32 0.0, %v566
  %v568 = vpop.f32.mrb[0].mxu0
  %v569 = vpop.f32.mrb[0].mxu0
  %v570 = vadd.f32 0.0, %v569
  %v571 = vpop.f32.mrb[0].mxu0
  %572 = vmatprep.mubr.bf16.mxu0 0
  %573 = vmatmul.mubr.bf16.gmra.mrb[0].mxu0 %v530
  %v574 = vpop.f32.mrb[0].mxu0
  %v575 = vadd.f32 0.0, %v574
  %v576 = vpop.f32.mrb[0].mxu0
  %v577 = vpop.f32.mrb[0].mxu0
  %v578 = vadd.f32 0.0, %v577
  %v579 = vpop.f32.mrb[0].mxu0
  %580 = vdwg.mxu0
  %v581 = vtanh.pop %v567
  %v582 = vtanh.pop %v570
  %v583 = vxor.u32 %v575, 2147483648
  %v584 = vxor.u32 %v578, 2147483648
  %v585 = vmul.f32 %v583, 1.442695
  %v586 = vpow.pop %v585
  %v587 = vmul.f32 %v584, 1.442695
  %v588 = vpow.pop %v587
  %v589 = vadd.f32 %v586, 1.0
  %v590 = vadd.f32 %v588, 1.0
  %v591 = vrcp.pop %v589
  %v592 = vmul.f32 1.0, %v591
  %v593 = vrcp.pop %v590
  %v594 = vmul.f32 1.0, %v593
  %v595 = vmul.f32 %v581, %v592
  %v596 = vmul.f32 %v582, %v594
  %v597 = vpack.c.bf16 %v596, %v595
  %s598 = scalar_lea.vmem %s4, 48
  %v599 = vld [vmem:[%s598] sm:$0xf]
  %v600 = vld [vmem:[%s598 + $0x4] sm:$0xf]
  %v601 = vld [vmem:[%s598 + $0x8] sm:$0xf]
  %v602 = vld [vmem:[%s598 + $0xc] sm:$0xf]
  %v603 = vld [vmem:[%s598 + $0x10] sm:$0xf]
  %v604 = vld [vmem:[%s598 + $0x14] sm:$0xf]
  %v611 = vunpack.c.l.b16 %v599
  %v612 = vunpack.c.l.b16 %v600
  %v613 = vunpack.c.l.b16 %v601
  %v614 = vunpack.c.l.b16 %v602
  %v615 = vunpack.c.l.b16 %v603
  %v616 = vunpack.c.l.b16 %v604
  %v617 = vpack.c.b16 %v612, %v611
  %v618 = vpack.c.b16 %v614, %v613
  %v619 = vpack.c.b16 %v616, %v615
  %v621 = vsel %vm239, %v617, 0
  %v624 = vsel %vm239, %v618, 0
  %v627 = vsel %vm239, %v619, 0
  %629 = vmatprep.subr.bf16.mxu0 0
  %630 = vmatpush1.bf16.msra.mxu0 %v597
  %631 = vmatprep.subr.bf16.mxu0 0
  %632 = vmatpush1.bf16.msra.mxu0 0
  %633 = vmatprep.subr.bf16.mxu0 0
  %634 = vmatpush1.bf16.msra.mxu0 0
  %635 = vmatprep.subr.bf16.mxu0 0
  %636 = vmatpush1.bf16.msra.mxu0 0
  %637 = vmatprep.subr.bf16.mxu0 0
  %638 = vmatpush1.bf16.msra.mxu0 0
  %639 = vmatprep.subr.bf16.mxu0 0
  %640 = vmatpush1.bf16.msra.mxu0 0
  %641 = vmatprep.subr.bf16.mxu0 0
  %642 = vmatpush1.bf16.msra.mxu0 0
  %643 = vmatprep.subr.bf16.mxu0 0
  %644 = vmatpush1.bf16.msra.mxu0 0
  %645 = vmatprep.subr.bf16.mxu0 0
  %646 = vmatpush1.bf16.msra.mxu0 0
  %647 = vmatprep.subr.bf16.mxu0 0
  %648 = vmatpush1.bf16.msra.mxu0 0
  %649 = vmatprep.subr.bf16.mxu0 0
  %650 = vmatpush1.bf16.msra.mxu0 0
  %651 = vmatprep.subr.bf16.mxu0 0
  %652 = vmatpush1.bf16.msra.mxu0 0
  %653 = vmatprep.subr.bf16.mxu0 0
  %654 = vmatpush1.bf16.msra.mxu0 0
  %655 = vmatprep.subr.bf16.mxu0 0
  %656 = vmatpush1.bf16.msra.mxu0 0
  %657 = vmatprep.subr.bf16.mxu0 0
  %658 = vmatpush1.bf16.msra.mxu0 0
  %659 = vmatprep.subr.bf16.mxu0 0
  %660 = vmatpush1.bf16.msra.mxu0 0
  %661 = vmatprep.mubr.bf16.mxu0 0
  %662 = vmatmul.mubr.bf16.gmra.mrb[0].mxu0 %v621
  %v663 = vpop.f32.mrb[0].mxu0
  %v664 = vadd.f32 0.0, %v663
  %v665 = vpop.f32.mrb[0].mxu0
  %v666 = vpop.f32.mrb[0].mxu0
  %v667 = vadd.f32 0.0, %v666
  %v668 = vpop.f32.mrb[0].mxu0
  %669 = vmatprep.mubr.bf16.mxu0 0
  %670 = vmatmul.mubr.bf16.gmra.mrb[0].mxu0 %v624
  %v671 = vpop.f32.mrb[0].mxu0
  %v672 = vadd.f32 0.0, %v671
  %v673 = vpop.f32.mrb[0].mxu0
  %v674 = vpop.f32.mrb[0].mxu0
  %v675 = vadd.f32 0.0, %v674
  %v676 = vpop.f32.mrb[0].mxu0
  %677 = vmatprep.mubr.bf16.mxu0 0
  %678 = vmatmul.mubr.bf16.gmra.mrb[0].mxu0 %v627
  %v679 = vpop.f32.mrb[0].mxu0
  %v680 = vadd.f32 0.0, %v679
  %v681 = vpop.f32.mrb[0].mxu0
  %v682 = vpop.f32.mrb[0].mxu0
  %v683 = vadd.f32 0.0, %v682
  %v684 = vpop.f32.mrb[0].mxu0
  %685 = vdwg.mxu0
  %v686 = vadd.f32 %v496, %v664
  %v687 = vadd.f32 %v497, %v667
  %v688 = vadd.f32 %v498, %v672
  %v689 = vadd.f32 %v499, %v675
  %v690 = vadd.f32 %v500, %v680
  %v691 = vadd.f32 %v501, %v683
  %692 = vrot.lane.b32.xlu0 %v686, 1
  %v693 = vpop.permute.xlu0 %692
  %694 = vrot.lane.b32.xlu0 %v687, 1
  %v695 = vpop.permute.xlu0 %694
  %v696 = vsel %vm121, %v693, 0.0
  %v697 = vsel %vm121, %v695, 0.0
  %v698 = vpack.c.bf16 %v697, %v696
  %v699 = vpack.c.bf16 %v687, %v686
  %s700 = scalar_lea.vmem %s3, 48
  %v701 = vld [vmem:[%s700] sm:$0xf]
  %v702 = vld [vmem:[%s700 + $0x4] sm:$0xf]
  %v703 = vld [vmem:[%s700 + $0x8] sm:$0xf]
  %v704 = vld [vmem:[%s700 + $0xc] sm:$0xf]
  %v709 = vunpack.c.l.b16 %v701
  %v710 = vunpack.c.l.b16 %v702
  %v711 = vunpack.c.l.b16 %v703
  %v712 = vunpack.c.l.b16 %v704
  %v713 = vpack.c.b16 %v710, %v709
  %v714 = vpack.c.b16 %v712, %v711
  %v716 = vsel %vm145, %v713, 0
  %v719 = vsel %vm145, %v714, 0
  %721 = vmatprep.subr.bf16.mxu0 0
  %722 = vmatpush1.bf16.msra.mxu0 %v698
  %723 = vmatprep.subr.bf16.mxu0 0
  %724 = vmatpush1.bf16.msra.mxu0 %v699
  %725 = vmatprep.subr.bf16.mxu0 0
  %726 = vmatpush1.bf16.msra.mxu0 %v130
  %727 = vmatprep.subr.bf16.mxu0 0
  %728 = vmatpush1.bf16.msra.mxu0 0
  %729 = vmatprep.subr.bf16.mxu0 0
  %730 = vmatpush1.bf16.msra.mxu0 0
  %731 = vmatprep.subr.bf16.mxu0 0
  %732 = vmatpush1.bf16.msra.mxu0 0
  %733 = vmatprep.subr.bf16.mxu0 0
  %734 = vmatpush1.bf16.msra.mxu0 0
  %735 = vmatprep.subr.bf16.mxu0 0
  %736 = vmatpush1.bf16.msra.mxu0 0
  %737 = vmatprep.subr.bf16.mxu0 0
  %738 = vmatpush1.bf16.msra.mxu0 0
  %739 = vmatprep.subr.bf16.mxu0 0
  %740 = vmatpush1.bf16.msra.mxu0 0
  %741 = vmatprep.subr.bf16.mxu0 0
  %742 = vmatpush1.bf16.msra.mxu0 0
  %743 = vmatprep.subr.bf16.mxu0 0
  %744 = vmatpush1.bf16.msra.mxu0 0
  %745 = vmatprep.subr.bf16.mxu0 0
  %746 = vmatpush1.bf16.msra.mxu0 0
  %747 = vmatprep.subr.bf16.mxu0 0
  %748 = vmatpush1.bf16.msra.mxu0 0
  %749 = vmatprep.subr.bf16.mxu0 0
  %750 = vmatpush1.bf16.msra.mxu0 0
  %751 = vmatprep.subr.bf16.mxu0 0
  %752 = vmatpush1.bf16.msra.mxu0 0
  %753 = vmatprep.mubr.bf16.mxu0 0
  %754 = vmatmul.mubr.bf16.gmra.mrb[0].mxu0 %v716
  %v755 = vpop.f32.mrb[0].mxu0
  %v756 = vadd.f32 0.0, %v755
  %v757 = vpop.f32.mrb[0].mxu0
  %v758 = vpop.f32.mrb[0].mxu0
  %v759 = vadd.f32 0.0, %v758
  %v760 = vpop.f32.mrb[0].mxu0
  %761 = vmatprep.mubr.bf16.mxu0 0
  %762 = vmatmul.mubr.bf16.gmra.mrb[0].mxu0 %v719
  %v763 = vpop.f32.mrb[0].mxu0
  %v764 = vadd.f32 0.0, %v763
  %v765 = vpop.f32.mrb[0].mxu0
  %v766 = vpop.f32.mrb[0].mxu0
  %v767 = vadd.f32 0.0, %v766
  %v768 = vpop.f32.mrb[0].mxu0
  %769 = vdwg.mxu0
  %v770 = vtanh.pop %v756
  %v771 = vtanh.pop %v759
  %v772 = vxor.u32 %v764, 2147483648
  %v773 = vxor.u32 %v767, 2147483648
  %v774 = vmul.f32 %v772, 1.442695
  %v775 = vpow.pop %v774
  %v776 = vmul.f32 %v773, 1.442695
  %v777 = vpow.pop %v776
  %v778 = vadd.f32 %v775, 1.0
  %v779 = vadd.f32 %v777, 1.0
  %v780 = vrcp.pop %v778
  %v781 = vmul.f32 1.0, %v780
  %v782 = vrcp.pop %v779
  %v783 = vmul.f32 1.0, %v782
  %v784 = vmul.f32 %v770, %v781
  %v785 = vmul.f32 %v771, %v783
  %v786 = vpack.c.bf16 %v785, %v784
  %s787 = scalar_lea.vmem %s4, 72
  %v788 = vld [vmem:[%s787] sm:$0xf]
  %v789 = vld [vmem:[%s787 + $0x4] sm:$0xf]
  %v790 = vld [vmem:[%s787 + $0x8] sm:$0xf]
  %v791 = vld [vmem:[%s787 + $0xc] sm:$0xf]
  %v792 = vld [vmem:[%s787 + $0x10] sm:$0xf]
  %v793 = vld [vmem:[%s787 + $0x14] sm:$0xf]
  %v800 = vunpack.c.l.b16 %v788
  %v801 = vunpack.c.l.b16 %v789
  %v802 = vunpack.c.l.b16 %v790
  %v803 = vunpack.c.l.b16 %v791
  %v804 = vunpack.c.l.b16 %v792
  %v805 = vunpack.c.l.b16 %v793
  %v806 = vpack.c.b16 %v801, %v800
  %v807 = vpack.c.b16 %v803, %v802
  %v808 = vpack.c.b16 %v805, %v804
  %v810 = vsel %vm239, %v806, 0
  %v813 = vsel %vm239, %v807, 0
  %v816 = vsel %vm239, %v808, 0
  %818 = vmatprep.subr.bf16.mxu0 0
  %819 = vmatpush1.bf16.msra.mxu0 %v786
  %820 = vmatprep.subr.bf16.mxu0 0
  %821 = vmatpush1.bf16.msra.mxu0 0
  %822 = vmatprep.subr.bf16.mxu0 0
  %823 = vmatpush1.bf16.msra.mxu0 0
  %824 = vmatprep.subr.bf16.mxu0 0
  %825 = vmatpush1.bf16.msra.mxu0 0
  %826 = vmatprep.subr.bf16.mxu0 0
  %827 = vmatpush1.bf16.msra.mxu0 0
  %828 = vmatprep.subr.bf16.mxu0 0
  %829 = vmatpush1.bf16.msra.mxu0 0
  %830 = vmatprep.subr.bf16.mxu0 0
  %831 = vmatpush1.bf16.msra.mxu0 0
  %832 = vmatprep.subr.bf16.mxu0 0
  %833 = vmatpush1.bf16.msra.mxu0 0
  %834 = vmatprep.subr.bf16.mxu0 0
  %835 = vmatpush1.bf16.msra.mxu0 0
  %836 = vmatprep.subr.bf16.mxu0 0
  %837 = vmatpush1.bf16.msra.mxu0 0
  %838 = vmatprep.subr.bf16.mxu0 0
  %839 = vmatpush1.bf16.msra.mxu0 0
  %840 = vmatprep.subr.bf16.mxu0 0
  %841 = vmatpush1.bf16.msra.mxu0 0
  %842 = vmatprep.subr.bf16.mxu0 0
  %843 = vmatpush1.bf16.msra.mxu0 0
  %844 = vmatprep.subr.bf16.mxu0 0
  %845 = vmatpush1.bf16.msra.mxu0 0
  %846 = vmatprep.subr.bf16.mxu0 0
  %847 = vmatpush1.bf16.msra.mxu0 0
  %848 = vmatprep.subr.bf16.mxu0 0
  %849 = vmatpush1.bf16.msra.mxu0 0
  %850 = vmatprep.mubr.bf16.mxu0 0
  %851 = vmatmul.mubr.bf16.gmra.mrb[0].mxu0 %v810
  %v852 = vpop.f32.mrb[0].mxu0
  %v853 = vadd.f32 0.0, %v852
  %v854 = vpop.f32.mrb[0].mxu0
  %v855 = vpop.f32.mrb[0].mxu0
  %v856 = vadd.f32 0.0, %v855
  %v857 = vpop.f32.mrb[0].mxu0
  %858 = vmatprep.mubr.bf16.mxu0 0
  %859 = vmatmul.mubr.bf16.gmra.mrb[0].mxu0 %v813
  %v860 = vpop.f32.mrb[0].mxu0
  %v861 = vadd.f32 0.0, %v860
  %v862 = vpop.f32.mrb[0].mxu0
  %v863 = vpop.f32.mrb[0].mxu0
  %v864 = vadd.f32 0.0, %v863
  %v865 = vpop.f32.mrb[0].mxu0
  %866 = vmatprep.mubr.bf16.mxu0 0
  %867 = vmatmul.mubr.bf16.gmra.mrb[0].mxu0 %v816
  %v868 = vpop.f32.mrb[0].mxu0
  %v869 = vadd.f32 0.0, %v868
  %v870 = vpop.f32.mrb[0].mxu0
  %v871 = vpop.f32.mrb[0].mxu0
  %v872 = vadd.f32 0.0, %v871
  %v873 = vpop.f32.mrb[0].mxu0
  %874 = vdwg.mxu0
  %v875 = vadd.f32 %v686, %v853
  %v876 = vadd.f32 %v687, %v856
  %v877 = vadd.f32 %v688, %v861
  %v878 = vadd.f32 %v689, %v864
  %v879 = vadd.f32 %v690, %v869
  %v880 = vadd.f32 %v691, %v872
  %881 = vrot.lane.b32.xlu0 %v875, 2
  %v882 = vpop.permute.xlu0 %881
  %883 = vrot.lane.b32.xlu0 %v876, 2
  %v884 = vpop.permute.xlu0 %883
  %v885 = vsel %vm312, %v882, 0.0
  %v886 = vsel %vm312, %v884, 0.0
  %v887 = vpack.c.bf16 %v886, %v885
  %v888 = vpack.c.bf16 %v876, %v875
  %s889 = scalar_lea.vmem %s3, 64
  %v890 = vld [vmem:[%s889] sm:$0xf]
  %v891 = vld [vmem:[%s889 + $0x4] sm:$0xf]
  %v892 = vld [vmem:[%s889 + $0x8] sm:$0xf]
  %v893 = vld [vmem:[%s889 + $0xc] sm:$0xf]
  %v898 = vunpack.c.l.b16 %v890
  %v899 = vunpack.c.l.b16 %v891
  %v900 = vunpack.c.l.b16 %v892
  %v901 = vunpack.c.l.b16 %v893
  %v902 = vpack.c.b16 %v899, %v898
  %v903 = vpack.c.b16 %v901, %v900
  %v905 = vsel %vm145, %v902, 0
  %v908 = vsel %vm145, %v903, 0
  %910 = vmatprep.subr.bf16.mxu0 0
  %911 = vmatpush1.bf16.msra.mxu0 %v887
  %912 = vmatprep.subr.bf16.mxu0 0
  %913 = vmatpush1.bf16.msra.mxu0 %v888
  %914 = vmatprep.subr.bf16.mxu0 0
  %915 = vmatpush1.bf16.msra.mxu0 %v130
  %916 = vmatprep.subr.bf16.mxu0 0
  %917 = vmatpush1.bf16.msra.mxu0 0
  %918 = vmatprep.subr.bf16.mxu0 0
  %919 = vmatpush1.bf16.msra.mxu0 0
  %920 = vmatprep.subr.bf16.mxu0 0
  %921 = vmatpush1.bf16.msra.mxu0 0
  %922 = vmatprep.subr.bf16.mxu0 0
  %923 = vmatpush1.bf16.msra.mxu0 0
  %924 = vmatprep.subr.bf16.mxu0 0
  %925 = vmatpush1.bf16.msra.mxu0 0
  %926 = vmatprep.subr.bf16.mxu0 0
  %927 = vmatpush1.bf16.msra.mxu0 0
  %928 = vmatprep.subr.bf16.mxu0 0
  %929 = vmatpush1.bf16.msra.mxu0 0
  %930 = vmatprep.subr.bf16.mxu0 0
  %931 = vmatpush1.bf16.msra.mxu0 0
  %932 = vmatprep.subr.bf16.mxu0 0
  %933 = vmatpush1.bf16.msra.mxu0 0
  %934 = vmatprep.subr.bf16.mxu0 0
  %935 = vmatpush1.bf16.msra.mxu0 0
  %936 = vmatprep.subr.bf16.mxu0 0
  %937 = vmatpush1.bf16.msra.mxu0 0
  %938 = vmatprep.subr.bf16.mxu0 0
  %939 = vmatpush1.bf16.msra.mxu0 0
  %940 = vmatprep.subr.bf16.mxu0 0
  %941 = vmatpush1.bf16.msra.mxu0 0
  %942 = vmatprep.mubr.bf16.mxu0 0
  %943 = vmatmul.mubr.bf16.gmra.mrb[0].mxu0 %v905
  %v944 = vpop.f32.mrb[0].mxu0
  %v945 = vadd.f32 0.0, %v944
  %v946 = vpop.f32.mrb[0].mxu0
  %v947 = vpop.f32.mrb[0].mxu0
  %v948 = vadd.f32 0.0, %v947
  %v949 = vpop.f32.mrb[0].mxu0
  %950 = vmatprep.mubr.bf16.mxu0 0
  %951 = vmatmul.mubr.bf16.gmra.mrb[0].mxu0 %v908
  %v952 = vpop.f32.mrb[0].mxu0
  %v953 = vadd.f32 0.0, %v952
  %v954 = vpop.f32.mrb[0].mxu0
  %v955 = vpop.f32.mrb[0].mxu0
  %v956 = vadd.f32 0.0, %v955
  %v957 = vpop.f32.mrb[0].mxu0
  %958 = vdwg.mxu0
  %v959 = vtanh.pop %v945
  %v960 = vtanh.pop %v948
  %v961 = vxor.u32 %v953, 2147483648
  %v962 = vxor.u32 %v956, 2147483648
  %v963 = vmul.f32 %v961, 1.442695
  %v964 = vpow.pop %v963
  %v965 = vmul.f32 %v962, 1.442695
  %v966 = vpow.pop %v965
  %v967 = vadd.f32 %v964, 1.0
  %v968 = vadd.f32 %v966, 1.0
  %v969 = vrcp.pop %v967
  %v970 = vmul.f32 1.0, %v969
  %v971 = vrcp.pop %v968
  %v972 = vmul.f32 1.0, %v971
  %v973 = vmul.f32 %v959, %v970
  %v974 = vmul.f32 %v960, %v972
  %v975 = vpack.c.bf16 %v974, %v973
  %s976 = scalar_lea.vmem %s4, 96
  %v977 = vld [vmem:[%s976] sm:$0xf]
  %v978 = vld [vmem:[%s976 + $0x4] sm:$0xf]
  %v979 = vld [vmem:[%s976 + $0x8] sm:$0xf]
  %v980 = vld [vmem:[%s976 + $0xc] sm:$0xf]
  %v981 = vld [vmem:[%s976 + $0x10] sm:$0xf]
  %v982 = vld [vmem:[%s976 + $0x14] sm:$0xf]
  %v989 = vunpack.c.l.b16 %v977
  %v990 = vunpack.c.l.b16 %v978
  %v991 = vunpack.c.l.b16 %v979
  %v992 = vunpack.c.l.b16 %v980
  %v993 = vunpack.c.l.b16 %v981
  %v994 = vunpack.c.l.b16 %v982
  %v995 = vpack.c.b16 %v990, %v989
  %v996 = vpack.c.b16 %v992, %v991
  %v997 = vpack.c.b16 %v994, %v993
  %v999 = vsel %vm239, %v995, 0
  %v1002 = vsel %vm239, %v996, 0
  %v1005 = vsel %vm239, %v997, 0
  %1007 = vmatprep.subr.bf16.mxu0 0
  %1008 = vmatpush1.bf16.msra.mxu0 %v975
  %1009 = vmatprep.subr.bf16.mxu0 0
  %1010 = vmatpush1.bf16.msra.mxu0 0
  %1011 = vmatprep.subr.bf16.mxu0 0
  %1012 = vmatpush1.bf16.msra.mxu0 0
  %1013 = vmatprep.subr.bf16.mxu0 0
  %1014 = vmatpush1.bf16.msra.mxu0 0
  %1015 = vmatprep.subr.bf16.mxu0 0
  %1016 = vmatpush1.bf16.msra.mxu0 0
  %1017 = vmatprep.subr.bf16.mxu0 0
  %1018 = vmatpush1.bf16.msra.mxu0 0
  %1019 = vmatprep.subr.bf16.mxu0 0
  %1020 = vmatpush1.bf16.msra.mxu0 0
  %1021 = vmatprep.subr.bf16.mxu0 0
  %1022 = vmatpush1.bf16.msra.mxu0 0
  %1023 = vmatprep.subr.bf16.mxu0 0
  %1024 = vmatpush1.bf16.msra.mxu0 0
  %1025 = vmatprep.subr.bf16.mxu0 0
  %1026 = vmatpush1.bf16.msra.mxu0 0
  %1027 = vmatprep.subr.bf16.mxu0 0
  %1028 = vmatpush1.bf16.msra.mxu0 0
  %1029 = vmatprep.subr.bf16.mxu0 0
  %1030 = vmatpush1.bf16.msra.mxu0 0
  %1031 = vmatprep.subr.bf16.mxu0 0
  %1032 = vmatpush1.bf16.msra.mxu0 0
  %1033 = vmatprep.subr.bf16.mxu0 0
  %1034 = vmatpush1.bf16.msra.mxu0 0
  %1035 = vmatprep.subr.bf16.mxu0 0
  %1036 = vmatpush1.bf16.msra.mxu0 0
  %1037 = vmatprep.subr.bf16.mxu0 0
  %1038 = vmatpush1.bf16.msra.mxu0 0
  %1039 = vmatprep.mubr.bf16.mxu0 0
  %1040 = vmatmul.mubr.bf16.gmra.mrb[0].mxu0 %v999
  %v1041 = vpop.f32.mrb[0].mxu0
  %v1042 = vadd.f32 0.0, %v1041
  %v1043 = vpop.f32.mrb[0].mxu0
  %v1044 = vpop.f32.mrb[0].mxu0
  %v1045 = vadd.f32 0.0, %v1044
  %v1046 = vpop.f32.mrb[0].mxu0
  %1047 = vmatprep.mubr.bf16.mxu0 0
  %1048 = vmatmul.mubr.bf16.gmra.mrb[0].mxu0 %v1002
  %v1049 = vpop.f32.mrb[0].mxu0
  %v1050 = vadd.f32 0.0, %v1049
  %v1051 = vpop.f32.mrb[0].mxu0
  %v1052 = vpop.f32.mrb[0].mxu0
  %v1053 = vadd.f32 0.0, %v1052
  %v1054 = vpop.f32.mrb[0].mxu0
  %1055 = vmatprep.mubr.bf16.mxu0 0
  %1056 = vmatmul.mubr.bf16.gmra.mrb[0].mxu0 %v1005
  %v1057 = vpop.f32.mrb[0].mxu0
  %v1058 = vadd.f32 0.0, %v1057
  %v1059 = vpop.f32.mrb[0].mxu0
  %v1060 = vpop.f32.mrb[0].mxu0
  %v1061 = vadd.f32 0.0, %v1060
  %v1062 = vpop.f32.mrb[0].mxu0
  %1063 = vdwg.mxu0
  %v1064 = vadd.f32 %v875, %v1042
  %v1065 = vadd.f32 %v876, %v1045
  %v1066 = vadd.f32 %v877, %v1050
  %v1067 = vadd.f32 %v878, %v1053
  %v1068 = vadd.f32 %v879, %v1058
  %v1069 = vadd.f32 %v880, %v1061
  %1070 = vrot.lane.b32.xlu0 %v1064, 4
  %v1071 = vpop.permute.xlu0 %1070
  %1072 = vrot.lane.b32.xlu0 %v1065, 4
  %v1073 = vpop.permute.xlu0 %1072
  %v1074 = vsel %vm502, %v1071, 0.0
  %v1075 = vsel %vm502, %v1073, 0.0
  %v1076 = vpack.c.bf16 %v1075, %v1074
  %v1077 = vpack.c.bf16 %v1065, %v1064
  %s1078 = scalar_lea.vmem %s3, 80
  %v1079 = vld [vmem:[%s1078] sm:$0xf]
  %v1080 = vld [vmem:[%s1078 + $0x4] sm:$0xf]
  %v1081 = vld [vmem:[%s1078 + $0x8] sm:$0xf]
  %v1082 = vld [vmem:[%s1078 + $0xc] sm:$0xf]
  %v1087 = vunpack.c.l.b16 %v1079
  %v1088 = vunpack.c.l.b16 %v1080
  %v1089 = vunpack.c.l.b16 %v1081
  %v1090 = vunpack.c.l.b16 %v1082
  %v1091 = vpack.c.b16 %v1088, %v1087
  %v1092 = vpack.c.b16 %v1090, %v1089
  %v1094 = vsel %vm145, %v1091, 0
  %v1097 = vsel %vm145, %v1092, 0
  %1099 = vmatprep.subr.bf16.mxu0 0
  %1100 = vmatpush1.bf16.msra.mxu0 %v1076
  %1101 = vmatprep.subr.bf16.mxu0 0
  %1102 = vmatpush1.bf16.msra.mxu0 %v1077
  %1103 = vmatprep.subr.bf16.mxu0 0
  %1104 = vmatpush1.bf16.msra.mxu0 %v130
  %1105 = vmatprep.subr.bf16.mxu0 0
  %1106 = vmatpush1.bf16.msra.mxu0 0
  %1107 = vmatprep.subr.bf16.mxu0 0
  %1108 = vmatpush1.bf16.msra.mxu0 0
  %1109 = vmatprep.subr.bf16.mxu0 0
  %1110 = vmatpush1.bf16.msra.mxu0 0
  %1111 = vmatprep.subr.bf16.mxu0 0
  %1112 = vmatpush1.bf16.msra.mxu0 0
  %1113 = vmatprep.subr.bf16.mxu0 0
  %1114 = vmatpush1.bf16.msra.mxu0 0
  %1115 = vmatprep.subr.bf16.mxu0 0
  %1116 = vmatpush1.bf16.msra.mxu0 0
  %1117 = vmatprep.subr.bf16.mxu0 0
  %1118 = vmatpush1.bf16.msra.mxu0 0
  %1119 = vmatprep.subr.bf16.mxu0 0
  %1120 = vmatpush1.bf16.msra.mxu0 0
  %1121 = vmatprep.subr.bf16.mxu0 0
  %1122 = vmatpush1.bf16.msra.mxu0 0
  %1123 = vmatprep.subr.bf16.mxu0 0
  %1124 = vmatpush1.bf16.msra.mxu0 0
  %1125 = vmatprep.subr.bf16.mxu0 0
  %1126 = vmatpush1.bf16.msra.mxu0 0
  %1127 = vmatprep.subr.bf16.mxu0 0
  %1128 = vmatpush1.bf16.msra.mxu0 0
  %1129 = vmatprep.subr.bf16.mxu0 0
  %1130 = vmatpush1.bf16.msra.mxu0 0
  %1131 = vmatprep.mubr.bf16.mxu0 0
  %1132 = vmatmul.mubr.bf16.gmra.mrb[0].mxu0 %v1094
  %v1133 = vpop.f32.mrb[0].mxu0
  %v1134 = vadd.f32 0.0, %v1133
  %v1135 = vpop.f32.mrb[0].mxu0
  %v1136 = vpop.f32.mrb[0].mxu0
  %v1137 = vadd.f32 0.0, %v1136
  %v1138 = vpop.f32.mrb[0].mxu0
  %1139 = vmatprep.mubr.bf16.mxu0 0
  %1140 = vmatmul.mubr.bf16.gmra.mrb[0].mxu0 %v1097
  %v1141 = vpop.f32.mrb[0].mxu0
  %v1142 = vadd.f32 0.0, %v1141
  %v1143 = vpop.f32.mrb[0].mxu0
  %v1144 = vpop.f32.mrb[0].mxu0
  %v1145 = vadd.f32 0.0, %v1144
  %v1146 = vpop.f32.mrb[0].mxu0
  %1147 = vdwg.mxu0
  %v1148 = vtanh.pop %v1134
  %v1149 = vtanh.pop %v1137
  %v1150 = vxor.u32 %v1142, 2147483648
  %v1151 = vxor.u32 %v1145, 2147483648
  %v1152 = vmul.f32 %v1150, 1.442695
  %v1153 = vpow.pop %v1152
  %v1154 = vmul.f32 %v1151, 1.442695
  %v1155 = vpow.pop %v1154
  %v1156 = vadd.f32 %v1153, 1.0
  %v1157 = vadd.f32 %v1155, 1.0
  %v1158 = vrcp.pop %v1156
  %v1159 = vmul.f32 1.0, %v1158
  %v1160 = vrcp.pop %v1157
  %v1161 = vmul.f32 1.0, %v1160
  %v1162 = vmul.f32 %v1148, %v1159
  %v1163 = vmul.f32 %v1149, %v1161
  %v1164 = vpack.c.bf16 %v1163, %v1162
  %s1165 = scalar_lea.vmem %s4, 120
  %v1166 = vld [vmem:[%s1165] sm:$0xf]
  %v1167 = vld [vmem:[%s1165 + $0x4] sm:$0xf]
  %v1168 = vld [vmem:[%s1165 + $0x8] sm:$0xf]
  %v1169 = vld [vmem:[%s1165 + $0xc] sm:$0xf]
  %v1170 = vld [vmem:[%s1165 + $0x10] sm:$0xf]
  %v1171 = vld [vmem:[%s1165 + $0x14] sm:$0xf]
  %v1178 = vunpack.c.l.b16 %v1166
  %v1179 = vunpack.c.l.b16 %v1167
  %v1180 = vunpack.c.l.b16 %v1168
  %v1181 = vunpack.c.l.b16 %v1169
  %v1182 = vunpack.c.l.b16 %v1170
  %v1183 = vunpack.c.l.b16 %v1171
  %v1184 = vpack.c.b16 %v1179, %v1178
  %v1185 = vpack.c.b16 %v1181, %v1180
  %v1186 = vpack.c.b16 %v1183, %v1182
  %v1188 = vsel %vm239, %v1184, 0
  %v1191 = vsel %vm239, %v1185, 0
  %v1194 = vsel %vm239, %v1186, 0
  %1196 = vmatprep.subr.bf16.mxu0 0
  %1197 = vmatpush1.bf16.msra.mxu0 %v1164
  %1198 = vmatprep.subr.bf16.mxu0 0
  %1199 = vmatpush1.bf16.msra.mxu0 0
  %1200 = vmatprep.subr.bf16.mxu0 0
  %1201 = vmatpush1.bf16.msra.mxu0 0
  %1202 = vmatprep.subr.bf16.mxu0 0
  %1203 = vmatpush1.bf16.msra.mxu0 0
  %1204 = vmatprep.subr.bf16.mxu0 0
  %1205 = vmatpush1.bf16.msra.mxu0 0
  %1206 = vmatprep.subr.bf16.mxu0 0
  %1207 = vmatpush1.bf16.msra.mxu0 0
  %1208 = vmatprep.subr.bf16.mxu0 0
  %1209 = vmatpush1.bf16.msra.mxu0 0
  %1210 = vmatprep.subr.bf16.mxu0 0
  %1211 = vmatpush1.bf16.msra.mxu0 0
  %1212 = vmatprep.subr.bf16.mxu0 0
  %1213 = vmatpush1.bf16.msra.mxu0 0
  %1214 = vmatprep.subr.bf16.mxu0 0
  %1215 = vmatpush1.bf16.msra.mxu0 0
  %1216 = vmatprep.subr.bf16.mxu0 0
  %1217 = vmatpush1.bf16.msra.mxu0 0
  %1218 = vmatprep.subr.bf16.mxu0 0
  %1219 = vmatpush1.bf16.msra.mxu0 0
  %1220 = vmatprep.subr.bf16.mxu0 0
  %1221 = vmatpush1.bf16.msra.mxu0 0
  %1222 = vmatprep.subr.bf16.mxu0 0
  %1223 = vmatpush1.bf16.msra.mxu0 0
  %1224 = vmatprep.subr.bf16.mxu0 0
  %1225 = vmatpush1.bf16.msra.mxu0 0
  %1226 = vmatprep.subr.bf16.mxu0 0
  %1227 = vmatpush1.bf16.msra.mxu0 0
  %1228 = vmatprep.mubr.bf16.mxu0 0
  %1229 = vmatmul.mubr.bf16.gmra.mrb[0].mxu0 %v1188
  %v1230 = vpop.f32.mrb[0].mxu0
  %v1231 = vpop.f32.mrb[0].mxu0
  %v1232 = vpop.f32.mrb[0].mxu0
  %v1233 = vpop.f32.mrb[0].mxu0
  %1234 = vmatprep.mubr.bf16.mxu0 0
  %1235 = vmatmul.mubr.bf16.gmra.mrb[0].mxu0 %v1191
  %v1236 = vpop.f32.mrb[0].mxu0
  %v1237 = vadd.f32 0.0, %v1236
  %v1238 = vpop.f32.mrb[0].mxu0
  %v1239 = vpop.f32.mrb[0].mxu0
  %v1240 = vadd.f32 0.0, %v1239
  %v1241 = vpop.f32.mrb[0].mxu0
  %1242 = vmatprep.mubr.bf16.mxu0 0
  %1243 = vmatmul.mubr.bf16.gmra.mrb[0].mxu0 %v1194
  %v1244 = vpop.f32.mrb[0].mxu0
  %v1245 = vadd.f32 0.0, %v1244
  %v1246 = vpop.f32.mrb[0].mxu0
  %v1247 = vpop.f32.mrb[0].mxu0
  %v1248 = vadd.f32 0.0, %v1247
  %v1249 = vpop.f32.mrb[0].mxu0
  %1250 = vdwg.mxu0
  %v1251 = vadd.f32 %v1066, %v1237
  %v1252 = vadd.f32 %v1067, %v1240
  %v1253 = vadd.f32 %v1068, %v1245
  %v1254 = vadd.f32 %v1069, %v1248
  %v1255 = vmax.f32 %v1251, 0.0
  %v1256 = vmax.f32 %v1252, 0.0
  %v1257 = vmax.f32 %v1253, 0.0
  %v1258 = vmax.f32 %v1254, 0.0
  %v1259 = vpack.c.bf16 %v1256, %v1255
  %v1260 = vpack.c.bf16 %v1258, %v1257
  %v1261 = vld [vmem:[%s5] sm:$0xf]
  %v1262 = vld [vmem:[%s5 + $0x4] sm:$0xf]
  %v1263 = vld [vmem:[%s5 + $0x8] sm:$0xf]
  %v1264 = vld [vmem:[%s5 + $0xc] sm:$0xf]
  %v1269 = vunpack.c.l.b16 %v1261
  %v1270 = vunpack.c.l.b16 %v1262
  %v1271 = vunpack.c.l.b16 %v1263
  %v1272 = vunpack.c.l.b16 %v1264
  %v1273 = vpack.c.b16 %v1270, %v1269
  %v1274 = vpack.c.b16 %v1272, %v1271
  %vm1275 = vcmask 261120
  %v1277 = vsel %vm1275, %v1273, 0
  %v1280 = vsel %vm1275, %v1274, 0
  %1282 = vmatprep.subr.bf16.mxu0 0
  %1283 = vmatpush1.bf16.msra.mxu0 %v1259
  %1284 = vmatprep.subr.bf16.mxu0 0
  %1285 = vmatpush1.bf16.msra.mxu0 %v1260
  %1286 = vmatprep.subr.bf16.mxu0 0
  %1287 = vmatpush1.bf16.msra.mxu0 0
  %1288 = vmatprep.subr.bf16.mxu0 0
  %1289 = vmatpush1.bf16.msra.mxu0 0
  %1290 = vmatprep.subr.bf16.mxu0 0
  %1291 = vmatpush1.bf16.msra.mxu0 0
  %1292 = vmatprep.subr.bf16.mxu0 0
  %1293 = vmatpush1.bf16.msra.mxu0 0
  %1294 = vmatprep.subr.bf16.mxu0 0
  %1295 = vmatpush1.bf16.msra.mxu0 0
  %1296 = vmatprep.subr.bf16.mxu0 0
  %1297 = vmatpush1.bf16.msra.mxu0 0
  %1298 = vmatprep.subr.bf16.mxu0 0
  %1299 = vmatpush1.bf16.msra.mxu0 0
  %1300 = vmatprep.subr.bf16.mxu0 0
  %1301 = vmatpush1.bf16.msra.mxu0 0
  %1302 = vmatprep.subr.bf16.mxu0 0
  %1303 = vmatpush1.bf16.msra.mxu0 0
  %1304 = vmatprep.subr.bf16.mxu0 0
  %1305 = vmatpush1.bf16.msra.mxu0 0
  %1306 = vmatprep.subr.bf16.mxu0 0
  %1307 = vmatpush1.bf16.msra.mxu0 0
  %1308 = vmatprep.subr.bf16.mxu0 0
  %1309 = vmatpush1.bf16.msra.mxu0 0
  %1310 = vmatprep.subr.bf16.mxu0 0
  %1311 = vmatpush1.bf16.msra.mxu0 0
  %1312 = vmatprep.subr.bf16.mxu0 0
  %1313 = vmatpush1.bf16.msra.mxu0 0
  %1314 = vmatprep.mubr.bf16.mxu0 0
  %1315 = vmatmul.mubr.bf16.gmra.mrb[0].mxu0 %v1277
  %v1316 = vpop.f32.mrb[0].mxu0
  %v1317 = vadd.f32 0.0, %v1316
  %v1318 = vpop.f32.mrb[0].mxu0
  %v1319 = vpop.f32.mrb[0].mxu0
  %v1320 = vadd.f32 0.0, %v1319
  %v1321 = vpop.f32.mrb[0].mxu0
  %1322 = vmatprep.mubr.bf16.mxu0 0
  %1323 = vmatmul.mubr.bf16.gmra.mrb[0].mxu0 %v1280
  %v1324 = vpop.f32.mrb[0].mxu0
  %v1325 = vadd.f32 0.0, %v1324
  %v1326 = vpop.f32.mrb[0].mxu0
  %v1327 = vpop.f32.mrb[0].mxu0
  %v1328 = vadd.f32 0.0, %v1327
  %v1329 = vpop.f32.mrb[0].mxu0
  %1330 = vdwg.mxu0
  %v1331 = vmax.f32 %v1317, 0.0
  %v1332 = vmax.f32 %v1320, 0.0
  %v1333 = vmax.f32 %v1325, 0.0
  %v1334 = vmax.f32 %v1328, 0.0
  %v1335 = vld [vmem:[%s6] sm:$0xf]
  %v1336 = vld [vmem:[%s6 + $0x4] sm:$0xf]
  %v1337 = vld [vmem:[%s6 + $0x8] sm:$0xf]
  %v1338 = vld [vmem:[%s6 + $0xc] sm:$0xf]
  %v1339 = vpack.c.bf16 %v1332, %v1331
  %v1340 = vpack.c.bf16 %v1334, %v1333
  %v1345 = vunpack.c.l.b16 %v1335
  %v1346 = vunpack.c.l.b16 %v1336
  %v1347 = vunpack.c.l.b16 %v1337
  %v1348 = vunpack.c.l.b16 %v1338
  %v1349 = vpack.c.b16 %v1346, %v1345
  %v1350 = vpack.c.b16 %v1348, %v1347
  %v1352 = vsel %vm1275, %v1349, 0
  %v1355 = vsel %vm1275, %v1350, 0
  %1357 = vmatprep.subr.bf16.mxu0 0
  %1358 = vmatpush1.bf16.msra.mxu0 %v1339
  %1359 = vmatprep.subr.bf16.mxu0 0
  %1360 = vmatpush1.bf16.msra.mxu0 %v1340
  %1361 = vmatprep.subr.bf16.mxu0 0
  %1362 = vmatpush1.bf16.msra.mxu0 0
  %1363 = vmatprep.subr.bf16.mxu0 0
  %1364 = vmatpush1.bf16.msra.mxu0 0
  %1365 = vmatprep.subr.bf16.mxu0 0
  %1366 = vmatpush1.bf16.msra.mxu0 0
  %1367 = vmatprep.subr.bf16.mxu0 0
  %1368 = vmatpush1.bf16.msra.mxu0 0
  %1369 = vmatprep.subr.bf16.mxu0 0
  %1370 = vmatpush1.bf16.msra.mxu0 0
  %1371 = vmatprep.subr.bf16.mxu0 0
  %1372 = vmatpush1.bf16.msra.mxu0 0
  %1373 = vmatprep.subr.bf16.mxu0 0
  %1374 = vmatpush1.bf16.msra.mxu0 0
  %1375 = vmatprep.subr.bf16.mxu0 0
  %1376 = vmatpush1.bf16.msra.mxu0 0
  %1377 = vmatprep.subr.bf16.mxu0 0
  %1378 = vmatpush1.bf16.msra.mxu0 0
  %1379 = vmatprep.subr.bf16.mxu0 0
  %1380 = vmatpush1.bf16.msra.mxu0 0
  %1381 = vmatprep.subr.bf16.mxu0 0
  %1382 = vmatpush1.bf16.msra.mxu0 0
  %1383 = vmatprep.subr.bf16.mxu0 0
  %1384 = vmatpush1.bf16.msra.mxu0 0
  %1385 = vmatprep.subr.bf16.mxu0 0
  %1386 = vmatpush1.bf16.msra.mxu0 0
  %1387 = vmatprep.subr.bf16.mxu0 0
  %1388 = vmatpush1.bf16.msra.mxu0 0
  %1389 = vmatprep.mubr.bf16.mxu0 0
  %1390 = vmatmul.mubr.bf16.gmra.mrb[0].mxu0 %v1352
  %v1391 = vpop.f32.mrb[0].mxu0
  %v1392 = vadd.f32 0.0, %v1391
  %v1393 = vpop.f32.mrb[0].mxu0
  %v1394 = vpop.f32.mrb[0].mxu0
  %v1395 = vadd.f32 0.0, %v1394
  %v1396 = vpop.f32.mrb[0].mxu0
  %1397 = vmatprep.mubr.bf16.mxu0 0
  %1398 = vmatmul.mubr.bf16.gmra.mrb[0].mxu0 %v1355
  %v1399 = vpop.f32.mrb[0].mxu0
  %v1400 = vadd.f32 0.0, %v1399
  %v1401 = vpop.f32.mrb[0].mxu0
  %v1402 = vpop.f32.mrb[0].mxu0
  %v1403 = vadd.f32 0.0, %v1402
  %v1404 = vpop.f32.mrb[0].mxu0
  %1405 = vdwg.mxu0
  %1406 = vst [vmem:[%s7] sm:$0xff] %v1392
  %1407 = vst [vmem:[%s7 + $0x8] sm:$0xff] %v1395
  %1408 = vst [vmem:[%s7 + $0x10] sm:$0xff] %v1400
  %1409 = vst [vmem:[%s7 + $0x18] sm:$0xff] %v1403
  // Predicated region
  $region30: #{_forward_impl.3} parent=0 // pred_check
    _
  $region31: #{_forward_impl.3} parent=0 // pred_check_branch
    %1411 = sbr.rel (0) target = $region33
  $region32: #{_forward_impl.3} parent=0 // pred_region
    _
  $region33: #{_forward_impl.3} parent=0 // pred_fallthru
    _
  // Predicated region
  $region34: #{_forward_impl.3} parent=0 // pred_check
    _
  $region35: #{_forward_impl.3} parent=0 // pred_check_branch
    %1413 = sbr.rel (0) target = $region37
  $region36: #{_forward_impl.3} parent=0 // pred_region
    _
  $region37: #{_forward_impl.3} parent=0 // pred_fallthru
    _

</llo_original>
